<compile_context>
chip_gen: v7x
topology: tpu7x:2x2x1
jax: 0.10.0
libtpu: 0.0.40
codegen_flags: <defaults>
</compile_context>

<pallas_src>
import functools

import jax
import jax.numpy as jnp
import numpy as np
from jax.experimental import pallas as pl
from jax.experimental.pallas import tpu as pltpu

# ----------------------------- configuration -------------------------------
INPUT_NC = 64        # norm_nc  (must be divisible by NUM_GROUPS)
SEG_NC = 8           # label_nc for image SAFT
TEXT_NC = 16         # label_nc for text SAFT
NHIDDEN = 128        # fixed in SAFT
NUM_GROUPS = 32      # fixed in create_normalization('group', ...)
EPS = 1e-5           # nn.GroupNorm default
N, H, W = 2, 8, 8
HW = H * W


# ------------------------------- kernel ------------------------------------
def gfm_kernel(x_ref, cond_ref, smat_ref, smatT_ref, gmat_ref, gn_ref,
               w1_ref, b1_ref, w2_ref, b2_ref, w3_ref, b3_ref,
               whg_ref, bhg_ref, whb_ref, bhb_ref, out_ref, *, c):
    f32 = jnp.float32
    bf16 = jnp.bfloat16

    # ---------------- param-free GroupNorm (all f32) ----------------
    x = x_ref[...]                                            # (R, C)
    xcat = jnp.concatenate([x, x * x], axis=1)                # (R, 2C) lane-dense
    ssum = jnp.dot(smat_ref[...], xcat,
                   preferred_element_type=f32)                # (N, 2C) per-sample sums
    stats = jnp.dot(ssum, gmat_ref[...],
                    preferred_element_type=f32)               # (N, 2C) = [mean | E[x^2]]
    mean = stats[:, :c]                                       # (N, C)
    var = jnp.maximum(stats[:, c:] - mean * mean, 0.0)        # one-pass, clamped
    inv = jax.lax.rsqrt(var + EPS)                            # (N, C)
    a = inv * gn_ref[0:1]                                     # per-sample scale
    b = gn_ref[1:2] - mean * a                                # per-sample shift
    a_full = jnp.dot(smatT_ref[...], a, preferred_element_type=f32)   # (R, C)
    b_full = jnp.dot(smatT_ref[...], b, preferred_element_type=f32)   # (R, C)
    xnorm = x * a_full + b_full                               # single fused pass

    # -------- fused dual SAFT (bf16 weights/activations, f32 acc) --------
    h = jax.nn.silu(jnp.dot(cond_ref[...], w1_ref[...],
                            preferred_element_type=f32) + b1_ref[...])
    h = jax.nn.silu(jnp.dot(h.astype(bf16), w2_ref[...],
                            preferred_element_type=f32) + b2_ref[...])
    h = jax.nn.silu(jnp.dot(h.astype(bf16), w3_ref[...],
                            preferred_element_type=f32) + b3_ref[...])
    h = h.astype(bf16)
    gsum = jnp.dot(h, whg_ref[...], preferred_element_type=f32) + bhg_ref[...]
    bsum = jnp.dot(h, whb_ref[...], preferred_element_type=f32) + bhb_ref[...]

    # image_sft_out + text_sft_out = xnorm*(2 + g_img + g_txt) + b_img + b_txt
    out_ref[...] = xnorm * (2.0 + gsum) + bsum


# --------------------------- parameter packing ------------------------------
def pack_params(params, cs, ct, n, hw):
    """Run ONCE at init: fuse the two SAFT branches into block-diagonal slabs
    and precompute the GroupNorm membership matrices (host-side numpy)."""
    nh = NHIDDEN
    c = INPUT_NC
    img, txt = params["img"], params["txt"]
    f32, bf16 = jnp.float32, jnp.bfloat16

    w1 = jnp.zeros((cs + ct, 2 * nh), f32)
    w1 = w1.at[:cs, :nh].set(img["w1"]).at[cs:, nh:].set(txt["w1"])
    b1 = jnp.concatenate([img["b1"], txt["b1"]], axis=1)

    def blockdiag(a, b):
        z = jnp.zeros((2 * nh, 2 * nh), f32)
        return z.at[:nh, :nh].set(a).at[nh:, nh:].set(b)

    w2 = blockdiag(img["w2"], txt["w2"])
    b2 = jnp.concatenate([img["b2"], txt["b2"]], axis=1)
    w3 = blockdiag(img["w3"], txt["w3"])
    b3 = jnp.concatenate([img["b3"], txt["b3"]], axis=1)

    # split gamma / beta heads -> two lane-aligned (2nh, C) matmuls
    whg = jnp.concatenate([img["wg"], txt["wg"]], axis=0)     # (2nh, C)
    bhg = img["bg"] + txt["bg"]                               # (1, C)
    whb = jnp.concatenate([img["wb"], txt["wb"]], axis=0)     # (2nh, C)
    bhb = img["bb"] + txt["bb"]                               # (1, C)

    gn = jnp.concatenate([params["gn_w"], params["gn_b"]], axis=0)   # (2, C)

    # group-membership matrix (pre-scaled so stats = mean / E[x^2] directly)
    cg = c // NUM_GROUPS
    gidx = np.arange(c) // cg
    same_group = (gidx[:, None] == gidx[None, :]).astype(np.float32)
    gmat_np = np.zeros((2 * c, 2 * c), np.float32)
    gmat_np[:c, :c] = same_group
    gmat_np[c:, c:] = same_group
    gmat = jnp.asarray(gmat_np / float(hw * cg))

    # sample-membership matrices (row -> sample)
    sidx = np.arange(n * hw) // hw
    smat_np = (np.arange(n)[:, None] == sidx[None, :]).astype(np.float32)
    smat = jnp.asarray(smat_np)                               # (N, N*HW)
    smatT = jnp.asarray(np.ascontiguousarray(smat_np.T))      # (N*HW, N)

    return dict(
        smat=smat, smatT=smatT, gmat=gmat, gn=gn,
        w1=w1, b1=b1,                               # tiny, keep f32
        w2=w2.astype(bf16), b2=b2,
        w3=w3.astype(bf16), b3=b3,
        whg=whg.astype(bf16), bhg=bhg,
        whb=whb.astype(bf16), bhb=bhb,
    )


# ------------------------------- wrapper ------------------------------------
def gfm_forward(input_feat, seg_mask, scm, packed):
    n, c, h, w = input_feat.shape
    cs = seg_mask.shape[1]
    ct = scm.shape[1]
    hw = h * w

    # NCHW -> flat channels-last slabs (boundary kept NCHW to match PyTorch).
    xf = jnp.transpose(input_feat, (0, 2, 3, 1)).reshape(n * hw, c)
    cond = jnp.concatenate(
        [jnp.transpose(seg_mask, (0, 2, 3, 1)).reshape(n * hw, cs),
         jnp.transpose(scm, (0, 2, 3, 1)).reshape(n * hw, ct)], axis=1)

    ins = (xf, cond,
           packed["smat"], packed["smatT"], packed["gmat"], packed["gn"],
           packed["w1"], packed["b1"], packed["w2"], packed["b2"],
           packed["w3"], packed["b3"], packed["whg"], packed["bhg"],
           packed["whb"], packed["bhb"])

    def full2d(arr):
        return pl.BlockSpec(arr.shape, lambda i: (0, 0))

    kernel = functools.partial(gfm_kernel, c=c)

    out = pl.pallas_call(
        kernel,
        out_shape=jax.ShapeDtypeStruct((n * hw, c), jnp.float32),
        grid_spec=pltpu.PrefetchScalarGridSpec(
            num_scalar_prefetch=0,
            grid=(1,),                       # single fused step (overhead-bound)
            in_specs=[full2d(a) for a in ins],
            out_specs=pl.BlockSpec((n * hw, c), lambda i: (0, 0)),
        ),
        compiler_params=pltpu.CompilerParams(
            dimension_semantics=("arbitrary",)),
    )(*ins)

    # (N*HW, C) -> NCHW
    return jnp.transpose(out.reshape(n, h, w, c), (0, 3, 1, 2))


# ------------------------- pure-JAX reference -------------------------------
def gfm_reference(input_feat, seg_mask, scm, p):
    n, c, h, w = input_feat.shape
    g = NUM_GROUPS
    x = input_feat.reshape(n, g, c // g, h, w)
    mean = x.mean(axis=(2, 3, 4), keepdims=True)
    var = x.var(axis=(2, 3, 4), keepdims=True)
    xhat = ((x - mean) / jnp.sqrt(var + EPS)).reshape(n, c, h, w)
    xnorm = xhat * p["gn_w"].reshape(1, c, 1, 1) + p["gn_b"].reshape(1, c, 1, 1)

    def saft(cond, pp):
        hcur = cond
        for wn, bn in (("w1", "b1"), ("w2", "b2"), ("w3", "b3")):
            hcur = jnp.einsum("nchw,cd->ndhw", hcur, pp[wn]) + pp[bn].reshape(1, -1, 1, 1)
            hcur = jax.nn.silu(hcur)
        gamma = jnp.einsum("nchw,cd->ndhw", hcur, pp["wg"]) + pp["bg"].reshape(1, -1, 1, 1)
        beta = jnp.einsum("nchw,cd->ndhw", hcur, pp["wb"]) + pp["bb"].reshape(1, -1, 1, 1)
        return gamma, beta

    gi_, bi_ = saft(seg_mask, p["img"])
    gt_, bt_ = saft(scm, p["txt"])
    return xnorm * (1.0 + gi_) + bi_ + xnorm * (1.0 + gt_) + bt_


# ----------------------------- param init -----------------------------------
def init_saft_params(key, label_nc, norm_nc):
    ks = jax.random.split(key, 10)

    def wmat(k, cin, cout):
        return (jax.random.normal(k, (cin, cout), jnp.float32) / np.sqrt(cin)).astype(jnp.float32)

    def bvec(k, cout):
        return (0.05 * jax.random.normal(k, (1, cout), jnp.float32)).astype(jnp.float32)

    return {
        "w1": wmat(ks[0], label_nc, NHIDDEN), "b1": bvec(ks[1], NHIDDEN),
        "w2": wmat(ks[2], NHIDDEN, NHIDDEN), "b2": bvec(ks[3], NHIDDEN),
        "w3": wmat(ks[4], NHIDDEN, NHIDDEN), "b3": bvec(ks[5], NHIDDEN),
        "wg": wmat(ks[6], NHIDDEN, norm_nc), "bg": bvec(ks[7], norm_nc),
        "wb": wmat(ks[8], NHIDDEN, norm_nc), "bb": bvec(ks[9], norm_nc),
    }


def init_params(key):
    k_gw, k_gb, k_img, k_txt = jax.random.split(key, 4)
    return {
        "gn_w": (1.0 + 0.1 * jax.random.normal(k_gw, (1, INPUT_NC), jnp.float32)),
        "gn_b": (0.1 * jax.random.normal(k_gb, (1, INPUT_NC), jnp.float32)),
        "img": init_saft_params(k_img, SEG_NC, INPUT_NC),
        "txt": init_saft_params(k_txt, TEXT_NC, INPUT_NC),
    }


# --------------------------------- main --------------------------------------
if __name__ == "__main__":
    root = jax.random.PRNGKey(0)
    k_x, k_seg, k_scm, k_p = jax.random.split(root, 4)

    input_feat = jax.random.normal(k_x, (N, INPUT_NC, H, W), jnp.float32)
    seg_mask = jax.random.normal(k_seg, (N, SEG_NC, H, W), jnp.float32)
    scm = jax.random.normal(k_scm, (N, TEXT_NC, H, W), jnp.float32)
    params = init_params(k_p)

    # Packed slabs built ONCE (init time); the jitted forward only does layout
    # plumbing + the single fused Pallas call.
    packed = pack_params(params, SEG_NC, TEXT_NC, N, HW)
    gfm = jax.jit(gfm_forward)

    out = jax.block_until_ready(gfm(input_feat, seg_mask, scm, packed))

    ref = jax.block_until_ready(gfm_reference(input_feat, seg_mask, scm, params))
    # Tolerance loosened vs v2: SAFT trunk/head matmuls run bf16 x bf16 with
    # f32 accumulation against an all-f32 reference.
    np.testing.assert_allclose(np.asarray(out), np.asarray(ref),
                               rtol=2e-2, atol=2e-2)

    print("KERNEL_OK")
</pallas_src>

<mosaic_0001>
module attributes {stable_mosaic.version = 11 : i64} {
  func.func @gfm_kernel(%arg0: i32, %arg1: memref<128x64xf32, #tpu.memory_space<vmem>>, %arg2: memref<128x24xf32, #tpu.memory_space<vmem>>, %arg3: memref<2x128xf32, #tpu.memory_space<vmem>>, %arg4: memref<128x2xf32, #tpu.memory_space<vmem>>, %arg5: memref<128x128xf32, #tpu.memory_space<vmem>>, %arg6: memref<2x64xf32, #tpu.memory_space<vmem>>, %arg7: memref<24x256xf32, #tpu.memory_space<vmem>>, %arg8: memref<1x256xf32, #tpu.memory_space<vmem>>, %arg9: memref<256x256xbf16, #tpu.memory_space<vmem>>, %arg10: memref<1x256xf32, #tpu.memory_space<vmem>>, %arg11: memref<256x256xbf16, #tpu.memory_space<vmem>>, %arg12: memref<1x256xf32, #tpu.memory_space<vmem>>, %arg13: memref<256x64xbf16, #tpu.memory_space<vmem>>, %arg14: memref<1x64xf32, #tpu.memory_space<vmem>>, %arg15: memref<256x64xbf16, #tpu.memory_space<vmem>>, %arg16: memref<1x64xf32, #tpu.memory_space<vmem>>, %arg17: memref<128x64xf32, #tpu.memory_space<vmem>>) attributes {dimension_semantics = [#tpu.dimension_semantics<arbitrary>], iteration_bounds = array<i64: 1>, scalar_prefetch = 0 : i64, scratch_operands = 0 : i64, tpu.core_type = #tpu.core_type<tc>, window_params = [{pipeline_mode = #tpu.pipeline_mode<synchronous>, transform_indices = @transform_0, window_bounds = array<i64: 128, 64>}, {pipeline_mode = #tpu.pipeline_mode<synchronous>, transform_indices = @transform_1, window_bounds = array<i64: 128, 24>}, {pipeline_mode = #tpu.pipeline_mode<synchronous>, transform_indices = @transform_2, window_bounds = array<i64: 2, 128>}, {pipeline_mode = #tpu.pipeline_mode<synchronous>, transform_indices = @transform_3, window_bounds = array<i64: 128, 2>}, {pipeline_mode = #tpu.pipeline_mode<synchronous>, transform_indices = @transform_4, window_bounds = array<i64: 128, 128>}, {pipeline_mode = #tpu.pipeline_mode<synchronous>, transform_indices = @transform_5, window_bounds = array<i64: 2, 64>}, {pipeline_mode = #tpu.pipeline_mode<synchronous>, transform_indices = @transform_6, window_bounds = array<i64: 24, 256>}, {pipeline_mode = #tpu.pipeline_mode<synchronous>, transform_indices = @transform_7, window_bounds = array<i64: 1, 256>}, {pipeline_mode = #tpu.pipeline_mode<synchronous>, transform_indices = @transform_8, window_bounds = array<i64: 256, 256>}, {pipeline_mode = #tpu.pipeline_mode<synchronous>, transform_indices = @transform_9, window_bounds = array<i64: 1, 256>}, {pipeline_mode = #tpu.pipeline_mode<synchronous>, transform_indices = @transform_10, window_bounds = array<i64: 256, 256>}, {pipeline_mode = #tpu.pipeline_mode<synchronous>, transform_indices = @transform_11, window_bounds = array<i64: 1, 256>}, {pipeline_mode = #tpu.pipeline_mode<synchronous>, transform_indices = @transform_12, window_bounds = array<i64: 256, 64>}, {pipeline_mode = #tpu.pipeline_mode<synchronous>, transform_indices = @transform_13, window_bounds = array<i64: 1, 64>}, {pipeline_mode = #tpu.pipeline_mode<synchronous>, transform_indices = @transform_14, window_bounds = array<i64: 256, 64>}, {pipeline_mode = #tpu.pipeline_mode<synchronous>, transform_indices = @transform_15, window_bounds = array<i64: 1, 64>}, {pipeline_mode = #tpu.pipeline_mode<synchronous>, transform_indices = @transform_16, window_bounds = array<i64: 128, 64>}]} {
    %c0 = arith.constant 0 : index
    %c0_0 = arith.constant 0 : index
    %0 = vector.load %arg1[%c0, %c0_0] : memref<128x64xf32, #tpu.memory_space<vmem>>, vector<128x64xf32>
    %1 = arith.mulf %0, %0 : vector<128x64xf32>
    %2 = tpu.concatenate %0, %1 in 1 : vector<128x64xf32>, vector<128x64xf32> -> vector<128x128xf32>
    %c0_1 = arith.constant 0 : index
    %c0_2 = arith.constant 0 : index
    %3 = vector.load %arg3[%c0_1, %c0_2] : memref<2x128xf32, #tpu.memory_space<vmem>>, vector<2x128xf32>
    %cst = arith.constant dense<0.000000e+00> : vector<2x128xf32>
    %4 = tpu.matmul %3, %2, %cst {dimension_numbers = #tpu.dot_dimension_numbers<[1], [0], [0], [1], [0, 0, 1, 1], [], []>} : vector<2x128xf32>, vector<128x128xf32>, vector<2x128xf32> -> vector<2x128xf32>
    %c0_3 = arith.constant 0 : index
    %c0_4 = arith.constant 0 : index
    %5 = vector.load %arg5[%c0_3, %c0_4] : memref<128x128xf32, #tpu.memory_space<vmem>>, vector<128x128xf32>
    %cst_5 = arith.constant dense<0.000000e+00> : vector<2x128xf32>
    %6 = tpu.matmul %4, %5, %cst_5 {dimension_numbers = #tpu.dot_dimension_numbers<[1], [0], [0], [1], [0, 0, 1, 1], [], []>} : vector<2x128xf32>, vector<128x128xf32>, vector<2x128xf32> -> vector<2x128xf32>
    %7 = vector.extract_strided_slice %6 {offsets = [0, 0], sizes = [2, 64], strides = [1, 1]} : vector<2x128xf32> to vector<2x64xf32>
    %8 = vector.extract_strided_slice %6 {offsets = [0, 64], sizes = [2, 64], strides = [1, 1]} : vector<2x128xf32> to vector<2x64xf32>
    %9 = arith.mulf %7, %7 : vector<2x64xf32>
    %10 = arith.subf %8, %9 : vector<2x64xf32>
    %cst_6 = arith.constant 0.000000e+00 : f32
    %11 = vector.broadcast %cst_6 : f32 to vector<2x64xf32>
    %12 = arith.maximumf %10, %11 : vector<2x64xf32>
    %cst_7 = arith.constant 9.99999974E-6 : f32
    %13 = vector.broadcast %cst_7 : f32 to vector<2x64xf32>
    %14 = arith.addf %12, %13 : vector<2x64xf32>
    %15 = math.rsqrt %14 : vector<2x64xf32>
    %c0_8 = arith.constant 0 : index
    %c0_9 = arith.constant 0 : index
    %16 = vector.load %arg6[%c0_8, %c0_9] : memref<2x64xf32, #tpu.memory_space<vmem>>, vector<1x64xf32>
    %17 = vector.broadcast %16 : vector<1x64xf32> to vector<2x64xf32>
    %18 = arith.mulf %15, %17 : vector<2x64xf32>
    %c1 = arith.constant 1 : index
    %c0_10 = arith.constant 0 : index
    %19 = vector.load %arg6[%c1, %c0_10] : memref<2x64xf32, #tpu.memory_space<vmem>>, vector<1x64xf32>
    %20 = arith.mulf %7, %18 : vector<2x64xf32>
    %21 = vector.broadcast %19 : vector<1x64xf32> to vector<2x64xf32>
    %22 = arith.subf %21, %20 : vector<2x64xf32>
    %c0_11 = arith.constant 0 : index
    %c0_12 = arith.constant 0 : index
    %23 = vector.load %arg4[%c0_11, %c0_12] : memref<128x2xf32, #tpu.memory_space<vmem>>, vector<128x2xf32>
    %cst_13 = arith.constant dense<0.000000e+00> : vector<128x64xf32>
    %24 = tpu.matmul %23, %18, %cst_13 {dimension_numbers = #tpu.dot_dimension_numbers<[1], [0], [0], [1], [0, 0, 1, 1], [], []>} : vector<128x2xf32>, vector<2x64xf32>, vector<128x64xf32> -> vector<128x64xf32>
    %c0_14 = arith.constant 0 : index
    %c0_15 = arith.constant 0 : index
    %25 = vector.load %arg4[%c0_14, %c0_15] : memref<128x2xf32, #tpu.memory_space<vmem>>, vector<128x2xf32>
    %cst_16 = arith.constant dense<0.000000e+00> : vector<128x64xf32>
    %26 = tpu.matmul %25, %22, %cst_16 {dimension_numbers = #tpu.dot_dimension_numbers<[1], [0], [0], [1], [0, 0, 1, 1], [], []>} : vector<128x2xf32>, vector<2x64xf32>, vector<128x64xf32> -> vector<128x64xf32>
    %27 = arith.mulf %0, %24 : vector<128x64xf32>
    %28 = arith.addf %27, %26 : vector<128x64xf32>
    %c0_17 = arith.constant 0 : index
    %c0_18 = arith.constant 0 : index
    %29 = vector.load %arg2[%c0_17, %c0_18] : memref<128x24xf32, #tpu.memory_space<vmem>>, vector<128x24xf32>
    %c0_19 = arith.constant 0 : index
    %c0_20 = arith.constant 0 : index
    %30 = vector.load %arg7[%c0_19, %c0_20] : memref<24x256xf32, #tpu.memory_space<vmem>>, vector<24x256xf32>
    %cst_21 = arith.constant dense<0.000000e+00> : vector<128x256xf32>
    %31 = tpu.matmul %29, %30, %cst_21 {dimension_numbers = #tpu.dot_dimension_numbers<[1], [0], [0], [1], [0, 0, 1, 1], [], []>} : vector<128x24xf32>, vector<24x256xf32>, vector<128x256xf32> -> vector<128x256xf32>
    %c0_22 = arith.constant 0 : index
    %c0_23 = arith.constant 0 : index
    %32 = vector.load %arg8[%c0_22, %c0_23] : memref<1x256xf32, #tpu.memory_space<vmem>>, vector<1x256xf32>
    %33 = vector.broadcast %32 : vector<1x256xf32> to vector<128x256xf32>
    %34 = arith.addf %31, %33 : vector<128x256xf32>
    %35 = arith.negf %34 : vector<128x256xf32>
    %36 = math.exp %35 : vector<128x256xf32>
    %cst_24 = arith.constant 1.000000e+00 : f32
    %37 = vector.broadcast %cst_24 : f32 to vector<128x256xf32>
    %38 = arith.addf %37, %36 : vector<128x256xf32>
    %39 = arith.divf %37, %38 : vector<128x256xf32>
    %40 = arith.mulf %34, %39 : vector<128x256xf32>
    %41 = arith.truncf %40 : vector<128x256xf32> to vector<128x256xbf16>
    %c0_25 = arith.constant 0 : index
    %c0_26 = arith.constant 0 : index
    %42 = vector.load %arg9[%c0_25, %c0_26] : memref<256x256xbf16, #tpu.memory_space<vmem>>, vector<256x256xbf16>
    %cst_27 = arith.constant dense<0.000000e+00> : vector<128x256xf32>
    %43 = tpu.matmul %41, %42, %cst_27 {dimension_numbers = #tpu.dot_dimension_numbers<[1], [0], [0], [1], [0, 0, 1, 1], [], []>} : vector<128x256xbf16>, vector<256x256xbf16>, vector<128x256xf32> -> vector<128x256xf32>
    %c0_28 = arith.constant 0 : index
    %c0_29 = arith.constant 0 : index
    %44 = vector.load %arg10[%c0_28, %c0_29] : memref<1x256xf32, #tpu.memory_space<vmem>>, vector<1x256xf32>
    %45 = vector.broadcast %44 : vector<1x256xf32> to vector<128x256xf32>
    %46 = arith.addf %43, %45 : vector<128x256xf32>
    %47 = arith.negf %46 : vector<128x256xf32>
    %48 = math.exp %47 : vector<128x256xf32>
    %cst_30 = arith.constant 1.000000e+00 : f32
    %49 = vector.broadcast %cst_30 : f32 to vector<128x256xf32>
    %50 = arith.addf %49, %48 : vector<128x256xf32>
    %51 = arith.divf %49, %50 : vector<128x256xf32>
    %52 = arith.mulf %46, %51 : vector<128x256xf32>
    %53 = arith.truncf %52 : vector<128x256xf32> to vector<128x256xbf16>
    %c0_31 = arith.constant 0 : index
    %c0_32 = arith.constant 0 : index
    %54 = vector.load %arg11[%c0_31, %c0_32] : memref<256x256xbf16, #tpu.memory_space<vmem>>, vector<256x256xbf16>
    %cst_33 = arith.constant dense<0.000000e+00> : vector<128x256xf32>
    %55 = tpu.matmul %53, %54, %cst_33 {dimension_numbers = #tpu.dot_dimension_numbers<[1], [0], [0], [1], [0, 0, 1, 1], [], []>} : vector<128x256xbf16>, vector<256x256xbf16>, vector<128x256xf32> -> vector<128x256xf32>
    %c0_34 = arith.constant 0 : index
    %c0_35 = arith.constant 0 : index
    %56 = vector.load %arg12[%c0_34, %c0_35] : memref<1x256xf32, #tpu.memory_space<vmem>>, vector<1x256xf32>
    %57 = vector.broadcast %56 : vector<1x256xf32> to vector<128x256xf32>
    %58 = arith.addf %55, %57 : vector<128x256xf32>
    %59 = arith.negf %58 : vector<128x256xf32>
    %60 = math.exp %59 : vector<128x256xf32>
    %cst_36 = arith.constant 1.000000e+00 : f32
    %61 = vector.broadcast %cst_36 : f32 to vector<128x256xf32>
    %62 = arith.addf %61, %60 : vector<128x256xf32>
    %63 = arith.divf %61, %62 : vector<128x256xf32>
    %64 = arith.mulf %58, %63 : vector<128x256xf32>
    %65 = arith.truncf %64 : vector<128x256xf32> to vector<128x256xbf16>
    %c0_37 = arith.constant 0 : index
    %c0_38 = arith.constant 0 : index
    %66 = vector.load %arg13[%c0_37, %c0_38] : memref<256x64xbf16, #tpu.memory_space<vmem>>, vector<256x64xbf16>
    %cst_39 = arith.constant dense<0.000000e+00> : vector<128x64xf32>
    %67 = tpu.matmul %65, %66, %cst_39 {dimension_numbers = #tpu.dot_dimension_numbers<[1], [0], [0], [1], [0, 0, 1, 1], [], []>} : vector<128x256xbf16>, vector<256x64xbf16>, vector<128x64xf32> -> vector<128x64xf32>
    %c0_40 = arith.constant 0 : index
    %c0_41 = arith.constant 0 : index
    %68 = vector.load %arg14[%c0_40, %c0_41] : memref<1x64xf32, #tpu.memory_space<vmem>>, vector<1x64xf32>
    %69 = vector.broadcast %68 : vector<1x64xf32> to vector<128x64xf32>
    %70 = arith.addf %67, %69 : vector<128x64xf32>
    %c0_42 = arith.constant 0 : index
    %c0_43 = arith.constant 0 : index
    %71 = vector.load %arg15[%c0_42, %c0_43] : memref<256x64xbf16, #tpu.memory_space<vmem>>, vector<256x64xbf16>
    %cst_44 = arith.constant dense<0.000000e+00> : vector<128x64xf32>
    %72 = tpu.matmul %65, %71, %cst_44 {dimension_numbers = #tpu.dot_dimension_numbers<[1], [0], [0], [1], [0, 0, 1, 1], [], []>} : vector<128x256xbf16>, vector<256x64xbf16>, vector<128x64xf32> -> vector<128x64xf32>
    %c0_45 = arith.constant 0 : index
    %c0_46 = arith.constant 0 : index
    %73 = vector.load %arg16[%c0_45, %c0_46] : memref<1x64xf32, #tpu.memory_space<vmem>>, vector<1x64xf32>
    %74 = vector.broadcast %73 : vector<1x64xf32> to vector<128x64xf32>
    %75 = arith.addf %72, %74 : vector<128x64xf32>
    %cst_47 = arith.constant 2.000000e+00 : f32
    %76 = vector.broadcast %cst_47 : f32 to vector<128x64xf32>
    %77 = arith.addf %76, %70 : vector<128x64xf32>
    %78 = arith.mulf %28, %77 : vector<128x64xf32>
    %79 = arith.addf %78, %75 : vector<128x64xf32>
    %c0_48 = arith.constant 0 : index
    %c0_49 = arith.constant 0 : index
    %80 = vector.load %arg17[%c0_48, %c0_49] : memref<128x64xf32, #tpu.memory_space<vmem>>, vector<128x64xf32>
    tpu.vector_store %arg17[%c0_48, %c0_49], %79 {strides = array<i32>} : memref<128x64xf32, #tpu.memory_space<vmem>>, vector<128x64xf32>,
    return
  }
  func.func @transform_0(%arg0: i32) -> (i32, i32) {
    %c0_i32 = arith.constant 0 : i32
    %c0_i32_0 = arith.constant 0 : i32
    %c0_i32_1 = arith.constant 0 : i32
    return %c0_i32, %c0_i32_0 : i32, i32
  }
  func.func @transform_1(%arg0: i32) -> (i32, i32) {
    %c0_i32 = arith.constant 0 : i32
    %c0_i32_0 = arith.constant 0 : i32
    %c0_i32_1 = arith.constant 0 : i32
    return %c0_i32, %c0_i32_0 : i32, i32
  }
  func.func @transform_2(%arg0: i32) -> (i32, i32) {
    %c0_i32 = arith.constant 0 : i32
    %c0_i32_0 = arith.constant 0 : i32
    %c0_i32_1 = arith.constant 0 : i32
    return %c0_i32, %c0_i32_0 : i32, i32
  }
  func.func @transform_3(%arg0: i32) -> (i32, i32) {
    %c0_i32 = arith.constant 0 : i32
    %c0_i32_0 = arith.constant 0 : i32
    %c0_i32_1 = arith.constant 0 : i32
    return %c0_i32, %c0_i32_0 : i32, i32
  }
  func.func @transform_4(%arg0: i32) -> (i32, i32) {
    %c0_i32 = arith.constant 0 : i32
    %c0_i32_0 = arith.constant 0 : i32
    %c0_i32_1 = arith.constant 0 : i32
    return %c0_i32, %c0_i32_0 : i32, i32
  }
  func.func @transform_5(%arg0: i32) -> (i32, i32) {
    %c0_i32 = arith.constant 0 : i32
    %c0_i32_0 = arith.constant 0 : i32
    %c0_i32_1 = arith.constant 0 : i32
    return %c0_i32, %c0_i32_0 : i32, i32
  }
  func.func @transform_6(%arg0: i32) -> (i32, i32) {
    %c0_i32 = arith.constant 0 : i32
    %c0_i32_0 = arith.constant 0 : i32
    %c0_i32_1 = arith.constant 0 : i32
    return %c0_i32, %c0_i32_0 : i32, i32
  }
  func.func @transform_7(%arg0: i32) -> (i32, i32) {
    %c0_i32 = arith.constant 0 : i32
    %c0_i32_0 = arith.constant 0 : i32
    %c0_i32_1 = arith.constant 0 : i32
    return %c0_i32, %c0_i32_0 : i32, i32
  }
  func.func @transform_8(%arg0: i32) -> (i32, i32) {
    %c0_i32 = arith.constant 0 : i32
    %c0_i32_0 = arith.constant 0 : i32
    %c0_i32_1 = arith.constant 0 : i32
    return %c0_i32, %c0_i32_0 : i32, i32
  }
  func.func @transform_9(%arg0: i32) -> (i32, i32) {
    %c0_i32 = arith.constant 0 : i32
    %c0_i32_0 = arith.constant 0 : i32
    %c0_i32_1 = arith.constant 0 : i32
    return %c0_i32, %c0_i32_0 : i32, i32
  }
  func.func @transform_10(%arg0: i32) -> (i32, i32) {
    %c0_i32 = arith.constant 0 : i32
    %c0_i32_0 = arith.constant 0 : i32
    %c0_i32_1 = arith.constant 0 : i32
    return %c0_i32, %c0_i32_0 : i32, i32
  }
  func.func @transform_11(%arg0: i32) -> (i32, i32) {
    %c0_i32 = arith.constant 0 : i32
    %c0_i32_0 = arith.constant 0 : i32
    %c0_i32_1 = arith.constant 0 : i32
    return %c0_i32, %c0_i32_0 : i32, i32
  }
  func.func @transform_12(%arg0: i32) -> (i32, i32) {
    %c0_i32 = arith.constant 0 : i32
    %c0_i32_0 = arith.constant 0 : i32
    %c0_i32_1 = arith.constant 0 : i32
    return %c0_i32, %c0_i32_0 : i32, i32
  }
  func.func @transform_13(%arg0: i32) -> (i32, i32) {
    %c0_i32 = arith.constant 0 : i32
    %c0_i32_0 = arith.constant 0 : i32
    %c0_i32_1 = arith.constant 0 : i32
    return %c0_i32, %c0_i32_0 : i32, i32
  }
  func.func @transform_14(%arg0: i32) -> (i32, i32) {
    %c0_i32 = arith.constant 0 : i32
    %c0_i32_0 = arith.constant 0 : i32
    %c0_i32_1 = arith.constant 0 : i32
    return %c0_i32, %c0_i32_0 : i32, i32
  }
  func.func @transform_15(%arg0: i32) -> (i32, i32) {
    %c0_i32 = arith.constant 0 : i32
    %c0_i32_0 = arith.constant 0 : i32
    %c0_i32_1 = arith.constant 0 : i32
    return %c0_i32, %c0_i32_0 : i32, i32
  }
  func.func @transform_16(%arg0: i32) -> (i32, i32) {
    %c0_i32 = arith.constant 0 : i32
    %c0_i32_0 = arith.constant 0 : i32
    %c0_i32_1 = arith.constant 0 : i32
    return %c0_i32, %c0_i32_0 : i32, i32
  }
}

</mosaic_0001>

<llo_original>
// kernel: gfm_forward.1
$region0: #{gfm_forward.1}
  #allocation0 [shape = 'u32[]', space=smem, size = 0x4, offset = 0x4, fixed_abs, tag = 'smem constant byte address 0x4 - core index']
  #allocation1 [shape = 'u32[144,128]{1,0:T(1,128)}', space=vmem, size = 0x12000, scoped, tag = 'internal scratch']
  %s0 = inlined_call_operand.vmem [shape: f32[128,64], index: 0, kind: input, shape index: {}]
  %s1 = inlined_call_operand.vmem [shape: f32[128,24], index: 1, kind: input, shape index: {}]
  %s2 = inlined_call_operand.vmem [shape: f32[2,128], index: 2, kind: input, shape index: {}]
  %s3 = inlined_call_operand.vmem [shape: f32[128,2], index: 3, kind: input, shape index: {}]
  %s4 = inlined_call_operand.vmem [shape: f32[128,128], index: 4, kind: input, shape index: {}]
  %s5 = inlined_call_operand.vmem [shape: f32[2,64], index: 5, kind: input, shape index: {}]
  %s6 = inlined_call_operand.vmem [shape: f32[24,256], index: 6, kind: input, shape index: {}]
  %s7 = inlined_call_operand.vmem [shape: f32[1,256], index: 7, kind: input, shape index: {}]
  %s8 = inlined_call_operand.vmem [shape: bf16[256,256], index: 8, kind: input, shape index: {}]
  %s9 = inlined_call_operand.vmem [shape: f32[1,256], index: 9, kind: input, shape index: {}]
  %s10 = inlined_call_operand.vmem [shape: bf16[256,256], index: 10, kind: input, shape index: {}]
  %s11 = inlined_call_operand.vmem [shape: f32[1,256], index: 11, kind: input, shape index: {}]
  %s12 = inlined_call_operand.vmem [shape: bf16[256,64], index: 12, kind: input, shape index: {}]
  %s13 = inlined_call_operand.vmem [shape: f32[1,64], index: 13, kind: input, shape index: {}]
  %s14 = inlined_call_operand.vmem [shape: bf16[256,64], index: 14, kind: input, shape index: {}]
  %s15 = inlined_call_operand.vmem [shape: f32[1,64], index: 15, kind: input, shape index: {}]
  %s16 = inlined_call_operand.hbm [shape: f32[128,64], index: 16, kind: output, shape index: {}]
  %s17 = sld [smem:[#allocation0]]
  $region74: #{gfm_forward.1} parent=0
    _
  %s19 = ssub.s32 1, %s17
  %s20 = scalar_select 0, %s19, %s17
  $region1: #{gfm_forward.1} parent=0
    #allocation2 [shape = 'u8[65536]{0}', space=vmem, size = 0x10000, scoped, tag = 'output window, operand 0, single buffered']
    #allocation3 [shape = 's32[1]{0}', space=sflag, size = 0x4, scoped, tag = 'scoped memory for gfm_forward.1']
    %21 = vsyncpa [#allocation3], 0
    // Predicated region
    $region2: #{gfm_forward.1} parent=1 // pred_check
      _
    $region3: #{gfm_forward.1} parent=1 // pred_check_branch
      %23 = sbr.rel (0) target = $region5
    $region4: #{gfm_forward.1} parent=1 // pred_region
      _
    $region5: #{gfm_forward.1} parent=1 // pred_fallthru
      _
    // Predicated region
    $region6: #{gfm_forward.1} parent=1 // pred_check
      _
    $region7: #{gfm_forward.1} parent=1 // pred_check_branch
      %25 = sbr.rel (0) target = $region9
    $region8: #{gfm_forward.1} parent=1 // pred_region
      _
    $region9: #{gfm_forward.1} parent=1 // pred_fallthru
      _
    // Predicated region
    $region10: #{gfm_forward.1} parent=1 // pred_check
      _
    $region11: #{gfm_forward.1} parent=1 // pred_check_branch
      %27 = sbr.rel (0) target = $region13
    $region12: #{gfm_forward.1} parent=1 // pred_region
      _
    $region13: #{gfm_forward.1} parent=1 // pred_fallthru
      _
    // Predicated region
    $region14: #{gfm_forward.1} parent=1 // pred_check
      _
    $region15: #{gfm_forward.1} parent=1 // pred_check_branch
      %29 = sbr.rel (0) target = $region17
    $region16: #{gfm_forward.1} parent=1 // pred_region
      _
    $region17: #{gfm_forward.1} parent=1 // pred_fallthru
      _
    // Predicated region
    $region18: #{gfm_forward.1} parent=1 // pred_check
      _
    $region19: #{gfm_forward.1} parent=1 // pred_check_branch
      %31 = sbr.rel (0) target = $region21
    $region20: #{gfm_forward.1} parent=1 // pred_region
      _
    $region21: #{gfm_forward.1} parent=1 // pred_fallthru
      _
    // Predicated region
    $region22: #{gfm_forward.1} parent=1 // pred_check
      _
    $region23: #{gfm_forward.1} parent=1 // pred_check_branch
      %33 = sbr.rel (0) target = $region25
    $region24: #{gfm_forward.1} parent=1 // pred_region
      _
    $region25: #{gfm_forward.1} parent=1 // pred_fallthru
      _
    // Predicated region
    $region26: #{gfm_forward.1} parent=1 // pred_check
      _
    $region27: #{gfm_forward.1} parent=1 // pred_check_branch
      %35 = sbr.rel (0) target = $region29
    $region28: #{gfm_forward.1} parent=1 // pred_region
      _
    $region29: #{gfm_forward.1} parent=1 // pred_fallthru
      _
    // Predicated region
    $region30: #{gfm_forward.1} parent=1 // pred_check
      _
    $region31: #{gfm_forward.1} parent=1 // pred_check_branch
      %37 = sbr.rel (0) target = $region33
    $region32: #{gfm_forward.1} parent=1 // pred_region
      _
    $region33: #{gfm_forward.1} parent=1 // pred_fallthru
      _
    // Predicated region
    $region34: #{gfm_forward.1} parent=1 // pred_check
      _
    $region35: #{gfm_forward.1} parent=1 // pred_check_branch
      %39 = sbr.rel (0) target = $region37
    $region36: #{gfm_forward.1} parent=1 // pred_region
      _
    $region37: #{gfm_forward.1} parent=1 // pred_fallthru
      _
    // Predicated region
    $region38: #{gfm_forward.1} parent=1 // pred_check
      _
    $region39: #{gfm_forward.1} parent=1 // pred_check_branch
      %41 = sbr.rel (0) target = $region41
    $region40: #{gfm_forward.1} parent=1 // pred_region
      _
    $region41: #{gfm_forward.1} parent=1 // pred_fallthru
      _
    // Predicated region
    $region42: #{gfm_forward.1} parent=1 // pred_check
      _
    $region43: #{gfm_forward.1} parent=1 // pred_check_branch
      %43 = sbr.rel (0) target = $region45
    $region44: #{gfm_forward.1} parent=1 // pred_region
      _
    $region45: #{gfm_forward.1} parent=1 // pred_fallthru
      _
    // Predicated region
    $region46: #{gfm_forward.1} parent=1 // pred_check
      _
    $region47: #{gfm_forward.1} parent=1 // pred_check_branch
      %45 = sbr.rel (0) target = $region49
    $region48: #{gfm_forward.1} parent=1 // pred_region
      _
    $region49: #{gfm_forward.1} parent=1 // pred_fallthru
      _
    // Predicated region
    $region50: #{gfm_forward.1} parent=1 // pred_check
      _
    $region51: #{gfm_forward.1} parent=1 // pred_check_branch
      %47 = sbr.rel (0) target = $region53
    $region52: #{gfm_forward.1} parent=1 // pred_region
      _
    $region53: #{gfm_forward.1} parent=1 // pred_fallthru
      _
    // Predicated region
    $region54: #{gfm_forward.1} parent=1 // pred_check
      _
    $region55: #{gfm_forward.1} parent=1 // pred_check_branch
      %49 = sbr.rel (0) target = $region57
    $region56: #{gfm_forward.1} parent=1 // pred_region
      _
    $region57: #{gfm_forward.1} parent=1 // pred_fallthru
      _
    // Predicated region
    $region58: #{gfm_forward.1} parent=1 // pred_check
      _
    $region59: #{gfm_forward.1} parent=1 // pred_check_branch
      %51 = sbr.rel (0) target = $region61
    $region60: #{gfm_forward.1} parent=1 // pred_region
      _
    $region61: #{gfm_forward.1} parent=1 // pred_fallthru
      _
    // Predicated region
    $region62: #{gfm_forward.1} parent=1 // pred_check
      _
    $region63: #{gfm_forward.1} parent=1 // pred_check_branch
      %53 = sbr.rel (0) target = $region65
    $region64: #{gfm_forward.1} parent=1 // pred_region
      _
    $region65: #{gfm_forward.1} parent=1 // pred_fallthru
      _
    %v55 = vld [vmem:[%s0] sm:$0xff]
    %v56 = vld [vmem:[%s0 + $0x8] sm:$0xff]
    %v57 = vld [vmem:[%s0 + $0x10] sm:$0xff]
    %v58 = vld [vmem:[%s0 + $0x18] sm:$0xff]
    %v59 = vld [vmem:[%s0 + $0x20] sm:$0xff]
    %v60 = vld [vmem:[%s0 + $0x28] sm:$0xff]
    %v61 = vld [vmem:[%s0 + $0x30] sm:$0xff]
    %v62 = vld [vmem:[%s0 + $0x38] sm:$0xff]
    %v63 = vld [vmem:[%s0 + $0x40] sm:$0xff]
    %v64 = vld [vmem:[%s0 + $0x48] sm:$0xff]
    %v65 = vld [vmem:[%s0 + $0x50] sm:$0xff]
    %v66 = vld [vmem:[%s0 + $0x58] sm:$0xff]
    %v67 = vld [vmem:[%s0 + $0x60] sm:$0xff]
    %v68 = vld [vmem:[%s0 + $0x68] sm:$0xff]
    %v69 = vld [vmem:[%s0 + $0x70] sm:$0xff]
    %v70 = vld [vmem:[%s0 + $0x78] sm:$0xff]
    %v71 = vmul.f32 %v55, %v55
    %v72 = vmul.f32 %v56, %v56
    %v73 = vmul.f32 %v57, %v57
    %v74 = vmul.f32 %v58, %v58
    %v75 = vmul.f32 %v59, %v59
    %v76 = vmul.f32 %v60, %v60
    %v77 = vmul.f32 %v61, %v61
    %v78 = vmul.f32 %v62, %v62
    %v79 = vmul.f32 %v63, %v63
    %v80 = vmul.f32 %v64, %v64
    %v81 = vmul.f32 %v65, %v65
    %v82 = vmul.f32 %v66, %v66
    %v83 = vmul.f32 %v67, %v67
    %v84 = vmul.f32 %v68, %v68
    %v85 = vmul.f32 %v69, %v69
    %v86 = vmul.f32 %v70, %v70
    %103 = vrot.lane.b32.xlu0 %v71, 64
    %v104 = vpop.permute.xlu0 %103
    %105 = vrot.lane.b32.xlu0 %v72, 64
    %v106 = vpop.permute.xlu0 %105
    %107 = vrot.lane.b32.xlu0 %v73, 64
    %v108 = vpop.permute.xlu0 %107
    %109 = vrot.lane.b32.xlu0 %v74, 64
    %v110 = vpop.permute.xlu0 %109
    %111 = vrot.lane.b32.xlu0 %v75, 64
    %v112 = vpop.permute.xlu0 %111
    %113 = vrot.lane.b32.xlu0 %v76, 64
    %v114 = vpop.permute.xlu0 %113
    %115 = vrot.lane.b32.xlu0 %v77, 64
    %v116 = vpop.permute.xlu0 %115
    %117 = vrot.lane.b32.xlu0 %v78, 64
    %v118 = vpop.permute.xlu0 %117
    %119 = vrot.lane.b32.xlu0 %v79, 64
    %v120 = vpop.permute.xlu0 %119
    %121 = vrot.lane.b32.xlu0 %v80, 64
    %v122 = vpop.permute.xlu0 %121
    %123 = vrot.lane.b32.xlu0 %v81, 64
    %v124 = vpop.permute.xlu0 %123
    %125 = vrot.lane.b32.xlu0 %v82, 64
    %v126 = vpop.permute.xlu0 %125
    %127 = vrot.lane.b32.xlu0 %v83, 64
    %v128 = vpop.permute.xlu0 %127
    %129 = vrot.lane.b32.xlu0 %v84, 64
    %v130 = vpop.permute.xlu0 %129
    %131 = vrot.lane.b32.xlu0 %v85, 64
    %v132 = vpop.permute.xlu0 %131
    %133 = vrot.lane.b32.xlu0 %v86, 64
    %v134 = vpop.permute.xlu0 %133
    %vm151 = vcmask 523264
    %v152 = vsel %vm151, %v55, %v104
    %v153 = vsel %vm151, %v56, %v106
    %v154 = vsel %vm151, %v57, %v108
    %v155 = vsel %vm151, %v58, %v110
    %v156 = vsel %vm151, %v59, %v112
    %v157 = vsel %vm151, %v60, %v114
    %v158 = vsel %vm151, %v61, %v116
    %v159 = vsel %vm151, %v62, %v118
    %v160 = vsel %vm151, %v63, %v120
    %v161 = vsel %vm151, %v64, %v122
    %v162 = vsel %vm151, %v65, %v124
    %v163 = vsel %vm151, %v66, %v126
    %v164 = vsel %vm151, %v67, %v128
    %v165 = vsel %vm151, %v68, %v130
    %v166 = vsel %vm151, %v69, %v132
    %v167 = vsel %vm151, %v70, %v134
    %v168 = vld [vmem:[%s2] sm:$0x3]
    %169 = vmatprep.subr.mxu0 0.0
    %170 = vmatpush1.msra.mxu0 %v152
    %171 = vmatprep.subr.mxu0 0.0
    %172 = vmatpush1.msra.mxu0 %v153
    %173 = vmatprep.subr.mxu0 0.0
    %174 = vmatpush1.msra.mxu0 %v154
    %175 = vmatprep.subr.mxu0 0.0
    %176 = vmatpush1.msra.mxu0 %v155
    %177 = vmatprep.subr.mxu0 0.0
    %178 = vmatpush1.msra.mxu0 %v156
    %179 = vmatprep.subr.mxu0 0.0
    %180 = vmatpush1.msra.mxu0 %v157
    %181 = vmatprep.subr.mxu0 0.0
    %182 = vmatpush1.msra.mxu0 %v158
    %183 = vmatprep.subr.mxu0 0.0
    %184 = vmatpush1.msra.mxu0 %v159
    %185 = vmatprep.subr.mxu0 0.0
    %186 = vmatpush1.msra.mxu0 %v160
    %187 = vmatprep.subr.mxu0 0.0
    %188 = vmatpush1.msra.mxu0 %v161
    %189 = vmatprep.subr.mxu0 0.0
    %190 = vmatpush1.msra.mxu0 %v162
    %191 = vmatprep.subr.mxu0 0.0
    %192 = vmatpush1.msra.mxu0 %v163
    %193 = vmatprep.subr.mxu0 0.0
    %194 = vmatpush1.msra.mxu0 %v164
    %195 = vmatprep.subr.mxu0 0.0
    %196 = vmatpush1.msra.mxu0 %v165
    %197 = vmatprep.subr.mxu0 0.0
    %198 = vmatpush1.msra.mxu0 %v166
    %199 = vmatprep.subr.mxu0 0.0
    %200 = vmatpush1.msra.mxu0 %v167
    %201 = vmatprep.subr.mxu0 0.0
    %202 = vmatpush1.msra.mxu0 0.0
    %203 = vmatprep.subr.mxu0 0.0
    %204 = vmatpush1.msra.mxu0 0.0
    %205 = vmatprep.subr.mxu0 0.0
    %206 = vmatpush1.msra.mxu0 0.0
    %207 = vmatprep.subr.mxu0 0.0
    %208 = vmatpush1.msra.mxu0 0.0
    %209 = vmatprep.subr.mxu0 0.0
    %210 = vmatpush1.msra.mxu0 0.0
    %211 = vmatprep.subr.mxu0 0.0
    %212 = vmatpush1.msra.mxu0 0.0
    %213 = vmatprep.subr.mxu0 0.0
    %214 = vmatpush1.msra.mxu0 0.0
    %215 = vmatprep.subr.mxu0 0.0
    %216 = vmatpush1.msra.mxu0 0.0
    %217 = vmatprep.subr.mxu0 0.0
    %218 = vmatpush1.msra.mxu0 0.0
    %219 = vmatprep.subr.mxu0 0.0
    %220 = vmatpush1.msra.mxu0 0.0
    %221 = vmatprep.subr.mxu0 0.0
    %222 = vmatpush1.msra.mxu0 0.0
    %223 = vmatprep.subr.mxu0 0.0
    %224 = vmatpush1.msra.mxu0 0.0
    %225 = vmatprep.subr.mxu0 0.0
    %226 = vmatpush1.msra.mxu0 0.0
    %227 = vmatprep.subr.mxu0 0.0
    %228 = vmatpush1.msra.mxu0 0.0
    %229 = vmatprep.subr.mxu0 0.0
    %230 = vmatpush1.msra.mxu0 0.0
    %231 = vmatprep.subr.mxu0 0.0
    %232 = vmatpush1.msra.mxu0 0.0
    %233 = vmatprep.mubr.f32.mxu0 0.0
    %234 = vmatmul.mubr.f32.gmra.mrb[0].mxu0 %v168
    %v235 = vpop.f32.mrb[0].mxu0
    %v236 = vadd.f32 0.0, %v235
    %v237 = vpop.f32.mrb[0].mxu0
    %238 = vdwg.mxu0
    %v239 = vld [vmem:[%s4] sm:$0xff]
    %v240 = vld [vmem:[%s4 + $0x8] sm:$0xff]
    %v241 = vld [vmem:[%s4 + $0x10] sm:$0xff]
    %v242 = vld [vmem:[%s4 + $0x18] sm:$0xff]
    %v243 = vld [vmem:[%s4 + $0x20] sm:$0xff]
    %v244 = vld [vmem:[%s4 + $0x28] sm:$0xff]
    %v245 = vld [vmem:[%s4 + $0x30] sm:$0xff]
    %v246 = vld [vmem:[%s4 + $0x38] sm:$0xff]
    %v247 = vld [vmem:[%s4 + $0x40] sm:$0xff]
    %v248 = vld [vmem:[%s4 + $0x48] sm:$0xff]
    %v249 = vld [vmem:[%s4 + $0x50] sm:$0xff]
    %v250 = vld [vmem:[%s4 + $0x58] sm:$0xff]
    %v251 = vld [vmem:[%s4 + $0x60] sm:$0xff]
    %v252 = vld [vmem:[%s4 + $0x68] sm:$0xff]
    %v253 = vld [vmem:[%s4 + $0x70] sm:$0xff]
    %v254 = vld [vmem:[%s4 + $0x78] sm:$0xff]
    %255 = vmatprep.subr.mxu0 0.0
    %256 = vmatpush1.msra.mxu0 %v239
    %257 = vmatprep.subr.mxu0 0.0
    %258 = vmatpush1.msra.mxu0 %v240
    %259 = vmatprep.subr.mxu0 0.0
    %260 = vmatpush1.msra.mxu0 %v241
    %261 = vmatprep.subr.mxu0 0.0
    %262 = vmatpush1.msra.mxu0 %v242
    %263 = vmatprep.subr.mxu0 0.0
    %264 = vmatpush1.msra.mxu0 %v243
    %265 = vmatprep.subr.mxu0 0.0
    %266 = vmatpush1.msra.mxu0 %v244
    %267 = vmatprep.subr.mxu0 0.0
    %268 = vmatpush1.msra.mxu0 %v245
    %269 = vmatprep.subr.mxu0 0.0
    %270 = vmatpush1.msra.mxu0 %v246
    %271 = vmatprep.subr.mxu0 0.0
    %272 = vmatpush1.msra.mxu0 %v247
    %273 = vmatprep.subr.mxu0 0.0
    %274 = vmatpush1.msra.mxu0 %v248
    %275 = vmatprep.subr.mxu0 0.0
    %276 = vmatpush1.msra.mxu0 %v249
    %277 = vmatprep.subr.mxu0 0.0
    %278 = vmatpush1.msra.mxu0 %v250
    %279 = vmatprep.subr.mxu0 0.0
    %280 = vmatpush1.msra.mxu0 %v251
    %281 = vmatprep.subr.mxu0 0.0
    %282 = vmatpush1.msra.mxu0 %v252
    %283 = vmatprep.subr.mxu0 0.0
    %284 = vmatpush1.msra.mxu0 %v253
    %285 = vmatprep.subr.mxu0 0.0
    %286 = vmatpush1.msra.mxu0 %v254
    %287 = vmatprep.subr.mxu0 0.0
    %288 = vmatpush1.msra.mxu0 0.0
    %289 = vmatprep.subr.mxu0 0.0
    %290 = vmatpush1.msra.mxu0 0.0
    %291 = vmatprep.subr.mxu0 0.0
    %292 = vmatpush1.msra.mxu0 0.0
    %293 = vmatprep.subr.mxu0 0.0
    %294 = vmatpush1.msra.mxu0 0.0
    %295 = vmatprep.subr.mxu0 0.0
    %296 = vmatpush1.msra.mxu0 0.0
    %297 = vmatprep.subr.mxu0 0.0
    %298 = vmatpush1.msra.mxu0 0.0
    %299 = vmatprep.subr.mxu0 0.0
    %300 = vmatpush1.msra.mxu0 0.0
    %301 = vmatprep.subr.mxu0 0.0
    %302 = vmatpush1.msra.mxu0 0.0
    %303 = vmatprep.subr.mxu0 0.0
    %304 = vmatpush1.msra.mxu0 0.0
    %305 = vmatprep.subr.mxu0 0.0
    %306 = vmatpush1.msra.mxu0 0.0
    %307 = vmatprep.subr.mxu0 0.0
    %308 = vmatpush1.msra.mxu0 0.0
    %309 = vmatprep.subr.mxu0 0.0
    %310 = vmatpush1.msra.mxu0 0.0
    %311 = vmatprep.subr.mxu0 0.0
    %312 = vmatpush1.msra.mxu0 0.0
    %313 = vmatprep.subr.mxu0 0.0
    %314 = vmatpush1.msra.mxu0 0.0
    %315 = vmatprep.subr.mxu0 0.0
    %316 = vmatpush1.msra.mxu0 0.0
    %317 = vmatprep.subr.mxu0 0.0
    %318 = vmatpush1.msra.mxu0 0.0
    %319 = vmatprep.mubr.f32.mxu0 0.0
    %320 = vmatmul.mubr.f32.gmra.mrb[0].mxu0 %v236
    %v321 = vpop.f32.mrb[0].mxu0
    %v322 = vadd.f32 0.0, %v321
    %v323 = vpop.f32.mrb[0].mxu0
    %324 = vdwg.mxu0
    %v325 = vmul.f32 %v322, %v322
    %327 = vrot.lane.b32.xlu0 %v325, 64
    %v328 = vpop.permute.xlu0 %327
    %v330 = vsub.f32 %v322, %v328
    %v331 = vmax.f32 %v330, 0.0
    %v332 = vadd.f32 %v331, 1e-05
    %v333 = vrsqrt.pop %v332
    %v334 = vld [vmem:[%s5] sm:$0x1]
    %v335 = vlaneseq
    %v336 = vshrl.u32 %v335, 7
    %v337 = vsub.s32 0, %v336
    %v338 = vrot.slane %v334, %v337
    %340 = vrot.lane.b32.xlu0 %v338, 64
    %v341 = vpop.permute.xlu0 %340
    %v343 = vmul.f32 %v333, %v341
    %v344 = vld [vmem:[%s5 + $0x1] sm:$0x1]
    %346 = vrot.lane.b32.xlu0 %v343, 64
    %v347 = vpop.permute.xlu0 %346
    %v349 = vmul.f32 %v322, %v347
    %v350 = vlaneseq
    %v351 = vshrl.u32 %v350, 7
    %v352 = vsub.s32 0, %v351
    %v353 = vrot.slane %v344, %v352
    %v354 = vsub.f32 %v353, %v349
    %v355 = vld [vmem:[%s3] sm:$0xff]
    %v356 = vld [vmem:[%s3 + $0x8] sm:$0xff]
    %v357 = vld [vmem:[%s3 + $0x10] sm:$0xff]
    %v358 = vld [vmem:[%s3 + $0x18] sm:$0xff]
    %v359 = vld [vmem:[%s3 + $0x20] sm:$0xff]
    %v360 = vld [vmem:[%s3 + $0x28] sm:$0xff]
    %v361 = vld [vmem:[%s3 + $0x30] sm:$0xff]
    %v362 = vld [vmem:[%s3 + $0x38] sm:$0xff]
    %v363 = vld [vmem:[%s3 + $0x40] sm:$0xff]
    %v364 = vld [vmem:[%s3 + $0x48] sm:$0xff]
    %v365 = vld [vmem:[%s3 + $0x50] sm:$0xff]
    %v366 = vld [vmem:[%s3 + $0x58] sm:$0xff]
    %v367 = vld [vmem:[%s3 + $0x60] sm:$0xff]
    %v368 = vld [vmem:[%s3 + $0x68] sm:$0xff]
    %v369 = vld [vmem:[%s3 + $0x70] sm:$0xff]
    %v370 = vld [vmem:[%s3 + $0x78] sm:$0xff]
    %vm371 = vcmask 15360
    %v373 = vsel %vm371, %v355, 0
    %v376 = vsel %vm371, %v356, 0
    %v379 = vsel %vm371, %v357, 0
    %v382 = vsel %vm371, %v358, 0
    %v385 = vsel %vm371, %v359, 0
    %v388 = vsel %vm371, %v360, 0
    %v391 = vsel %vm371, %v361, 0
    %v394 = vsel %vm371, %v362, 0
    %v397 = vsel %vm371, %v363, 0
    %v400 = vsel %vm371, %v364, 0
    %v403 = vsel %vm371, %v365, 0
    %v406 = vsel %vm371, %v366, 0
    %v409 = vsel %vm371, %v367, 0
    %v412 = vsel %vm371, %v368, 0
    %v415 = vsel %vm371, %v369, 0
    %v418 = vsel %vm371, %v370, 0
    %vm420 = vcmask 1041408
    %v421 = vsel %vm420, %v347, 0
    %423 = vmatprep.subr.mxu0 0.0
    %424 = vmatpush1.msra.mxu0 %v421
    %425 = vmatprep.subr.mxu0 0.0
    %426 = vmatpush1.msra.mxu0 0.0
    %427 = vmatprep.subr.mxu0 0.0
    %428 = vmatpush1.msra.mxu0 0.0
    %429 = vmatprep.subr.mxu0 0.0
    %430 = vmatpush1.msra.mxu0 0.0
    %431 = vmatprep.subr.mxu0 0.0
    %432 = vmatpush1.msra.mxu0 0.0
    %433 = vmatprep.subr.mxu0 0.0
    %434 = vmatpush1.msra.mxu0 0.0
    %435 = vmatprep.subr.mxu0 0.0
    %436 = vmatpush1.msra.mxu0 0.0
    %437 = vmatprep.subr.mxu0 0.0
    %438 = vmatpush1.msra.mxu0 0.0
    %439 = vmatprep.subr.mxu0 0.0
    %440 = vmatpush1.msra.mxu0 0.0
    %441 = vmatprep.subr.mxu0 0.0
    %442 = vmatpush1.msra.mxu0 0.0
    %443 = vmatprep.subr.mxu0 0.0
    %444 = vmatpush1.msra.mxu0 0.0
    %445 = vmatprep.subr.mxu0 0.0
    %446 = vmatpush1.msra.mxu0 0.0
    %447 = vmatprep.subr.mxu0 0.0
    %448 = vmatpush1.msra.mxu0 0.0
    %449 = vmatprep.subr.mxu0 0.0
    %450 = vmatpush1.msra.mxu0 0.0
    %451 = vmatprep.subr.mxu0 0.0
    %452 = vmatpush1.msra.mxu0 0.0
    %453 = vmatprep.subr.mxu0 0.0
    %454 = vmatpush1.msra.mxu0 0.0
    %455 = vmatprep.subr.mxu0 0.0
    %456 = vmatpush1.msra.mxu0 0.0
    %457 = vmatprep.subr.mxu0 0.0
    %458 = vmatpush1.msra.mxu0 0.0
    %459 = vmatprep.subr.mxu0 0.0
    %460 = vmatpush1.msra.mxu0 0.0
    %461 = vmatprep.subr.mxu0 0.0
    %462 = vmatpush1.msra.mxu0 0.0
    %463 = vmatprep.subr.mxu0 0.0
    %464 = vmatpush1.msra.mxu0 0.0
    %465 = vmatprep.subr.mxu0 0.0
    %466 = vmatpush1.msra.mxu0 0.0
    %467 = vmatprep.subr.mxu0 0.0
    %468 = vmatpush1.msra.mxu0 0.0
    %469 = vmatprep.subr.mxu0 0.0
    %470 = vmatpush1.msra.mxu0 0.0
    %471 = vmatprep.subr.mxu0 0.0
    %472 = vmatpush1.msra.mxu0 0.0
    %473 = vmatprep.subr.mxu0 0.0
    %474 = vmatpush1.msra.mxu0 0.0
    %475 = vmatprep.subr.mxu0 0.0
    %476 = vmatpush1.msra.mxu0 0.0
    %477 = vmatprep.subr.mxu0 0.0
    %478 = vmatpush1.msra.mxu0 0.0
    %479 = vmatprep.subr.mxu0 0.0
    %480 = vmatpush1.msra.mxu0 0.0
    %481 = vmatprep.subr.mxu0 0.0
    %482 = vmatpush1.msra.mxu0 0.0
    %483 = vmatprep.subr.mxu0 0.0
    %484 = vmatpush1.msra.mxu0 0.0
    %485 = vmatprep.subr.mxu0 0.0
    %486 = vmatpush1.msra.mxu0 0.0
    %487 = vmatprep.mubr.f32.mxu0 0.0
    %488 = vmatmul.mubr.f32.gmra.mrb[0].mxu0 %v373
    %v489 = vpop.f32.mrb[0].mxu0
    %v490 = vadd.f32 0.0, %v489
    %v491 = vpop.f32.mrb[0].mxu0
    %492 = vmatprep.mubr.f32.mxu0 0.0
    %493 = vmatmul.mubr.f32.gmra.mrb[0].mxu0 %v376
    %v494 = vpop.f32.mrb[0].mxu0
    %v495 = vadd.f32 0.0, %v494
    %v496 = vpop.f32.mrb[0].mxu0
    %497 = vmatprep.mubr.f32.mxu0 0.0
    %498 = vmatmul.mubr.f32.gmra.mrb[0].mxu0 %v379
    %v499 = vpop.f32.mrb[0].mxu0
    %v500 = vadd.f32 0.0, %v499
    %v501 = vpop.f32.mrb[0].mxu0
    %502 = vmatprep.mubr.f32.mxu0 0.0
    %503 = vmatmul.mubr.f32.gmra.mrb[0].mxu0 %v382
    %v504 = vpop.f32.mrb[0].mxu0
    %v505 = vadd.f32 0.0, %v504
    %v506 = vpop.f32.mrb[0].mxu0
    %507 = vmatprep.mubr.f32.mxu0 0.0
    %508 = vmatmul.mubr.f32.gmra.mrb[0].mxu0 %v385
    %v509 = vpop.f32.mrb[0].mxu0
    %v510 = vadd.f32 0.0, %v509
    %v511 = vpop.f32.mrb[0].mxu0
    %512 = vmatprep.mubr.f32.mxu0 0.0
    %513 = vmatmul.mubr.f32.gmra.mrb[0].mxu0 %v388
    %v514 = vpop.f32.mrb[0].mxu0
    %v515 = vadd.f32 0.0, %v514
    %v516 = vpop.f32.mrb[0].mxu0
    %517 = vmatprep.mubr.f32.mxu0 0.0
    %518 = vmatmul.mubr.f32.gmra.mrb[0].mxu0 %v391
    %v519 = vpop.f32.mrb[0].mxu0
    %v520 = vadd.f32 0.0, %v519
    %v521 = vpop.f32.mrb[0].mxu0
    %522 = vmatprep.mubr.f32.mxu0 0.0
    %523 = vmatmul.mubr.f32.gmra.mrb[0].mxu0 %v394
    %v524 = vpop.f32.mrb[0].mxu0
    %v525 = vadd.f32 0.0, %v524
    %v526 = vpop.f32.mrb[0].mxu0
    %527 = vmatprep.mubr.f32.mxu0 0.0
    %528 = vmatmul.mubr.f32.gmra.mrb[0].mxu0 %v397
    %v529 = vpop.f32.mrb[0].mxu0
    %v530 = vadd.f32 0.0, %v529
    %v531 = vpop.f32.mrb[0].mxu0
    %532 = vmatprep.mubr.f32.mxu0 0.0
    %533 = vmatmul.mubr.f32.gmra.mrb[0].mxu0 %v400
    %v534 = vpop.f32.mrb[0].mxu0
    %v535 = vadd.f32 0.0, %v534
    %v536 = vpop.f32.mrb[0].mxu0
    %537 = vmatprep.mubr.f32.mxu0 0.0
    %538 = vmatmul.mubr.f32.gmra.mrb[0].mxu0 %v403
    %v539 = vpop.f32.mrb[0].mxu0
    %v540 = vadd.f32 0.0, %v539
    %v541 = vpop.f32.mrb[0].mxu0
    %542 = vmatprep.mubr.f32.mxu0 0.0
    %543 = vmatmul.mubr.f32.gmra.mrb[0].mxu0 %v406
    %v544 = vpop.f32.mrb[0].mxu0
    %v545 = vadd.f32 0.0, %v544
    %v546 = vpop.f32.mrb[0].mxu0
    %547 = vmatprep.mubr.f32.mxu0 0.0
    %548 = vmatmul.mubr.f32.gmra.mrb[0].mxu0 %v409
    %v549 = vpop.f32.mrb[0].mxu0
    %v550 = vadd.f32 0.0, %v549
    %v551 = vpop.f32.mrb[0].mxu0
    %552 = vmatprep.mubr.f32.mxu0 0.0
    %553 = vmatmul.mubr.f32.gmra.mrb[0].mxu0 %v412
    %v554 = vpop.f32.mrb[0].mxu0
    %v555 = vadd.f32 0.0, %v554
    %v556 = vpop.f32.mrb[0].mxu0
    %557 = vmatprep.mubr.f32.mxu0 0.0
    %558 = vmatmul.mubr.f32.gmra.mrb[0].mxu0 %v415
    %v559 = vpop.f32.mrb[0].mxu0
    %v560 = vadd.f32 0.0, %v559
    %v561 = vpop.f32.mrb[0].mxu0
    %562 = vmatprep.mubr.f32.mxu0 0.0
    %563 = vmatmul.mubr.f32.gmra.mrb[0].mxu0 %v418
    %v564 = vpop.f32.mrb[0].mxu0
    %v565 = vadd.f32 0.0, %v564
    %v566 = vpop.f32.mrb[0].mxu0
    %567 = vdwg.mxu0
    %v569 = vsel %vm420, %v354, 0
    %571 = vmatprep.subr.mxu0 0.0
    %572 = vmatpush1.msra.mxu0 %v569
    %573 = vmatprep.subr.mxu0 0.0
    %574 = vmatpush1.msra.mxu0 0.0
    %575 = vmatprep.subr.mxu0 0.0
    %576 = vmatpush1.msra.mxu0 0.0
    %577 = vmatprep.subr.mxu0 0.0
    %578 = vmatpush1.msra.mxu0 0.0
    %579 = vmatprep.subr.mxu0 0.0
    %580 = vmatpush1.msra.mxu0 0.0
    %581 = vmatprep.subr.mxu0 0.0
    %582 = vmatpush1.msra.mxu0 0.0
    %583 = vmatprep.subr.mxu0 0.0
    %584 = vmatpush1.msra.mxu0 0.0
    %585 = vmatprep.subr.mxu0 0.0
    %586 = vmatpush1.msra.mxu0 0.0
    %587 = vmatprep.subr.mxu0 0.0
    %588 = vmatpush1.msra.mxu0 0.0
    %589 = vmatprep.subr.mxu0 0.0
    %590 = vmatpush1.msra.mxu0 0.0
    %591 = vmatprep.subr.mxu0 0.0
    %592 = vmatpush1.msra.mxu0 0.0
    %593 = vmatprep.subr.mxu0 0.0
    %594 = vmatpush1.msra.mxu0 0.0
    %595 = vmatprep.subr.mxu0 0.0
    %596 = vmatpush1.msra.mxu0 0.0
    %597 = vmatprep.subr.mxu0 0.0
    %598 = vmatpush1.msra.mxu0 0.0
    %599 = vmatprep.subr.mxu0 0.0
    %600 = vmatpush1.msra.mxu0 0.0
    %601 = vmatprep.subr.mxu0 0.0
    %602 = vmatpush1.msra.mxu0 0.0
    %603 = vmatprep.subr.mxu0 0.0
    %604 = vmatpush1.msra.mxu0 0.0
    %605 = vmatprep.subr.mxu0 0.0
    %606 = vmatpush1.msra.mxu0 0.0
    %607 = vmatprep.subr.mxu0 0.0
    %608 = vmatpush1.msra.mxu0 0.0
    %609 = vmatprep.subr.mxu0 0.0
    %610 = vmatpush1.msra.mxu0 0.0
    %611 = vmatprep.subr.mxu0 0.0
    %612 = vmatpush1.msra.mxu0 0.0
    %613 = vmatprep.subr.mxu0 0.0
    %614 = vmatpush1.msra.mxu0 0.0
    %615 = vmatprep.subr.mxu0 0.0
    %616 = vmatpush1.msra.mxu0 0.0
    %617 = vmatprep.subr.mxu0 0.0
    %618 = vmatpush1.msra.mxu0 0.0
    %619 = vmatprep.subr.mxu0 0.0
    %620 = vmatpush1.msra.mxu0 0.0
    %621 = vmatprep.subr.mxu0 0.0
    %622 = vmatpush1.msra.mxu0 0.0
    %623 = vmatprep.subr.mxu0 0.0
    %624 = vmatpush1.msra.mxu0 0.0
    %625 = vmatprep.subr.mxu0 0.0
    %626 = vmatpush1.msra.mxu0 0.0
    %627 = vmatprep.subr.mxu0 0.0
    %628 = vmatpush1.msra.mxu0 0.0
    %629 = vmatprep.subr.mxu0 0.0
    %630 = vmatpush1.msra.mxu0 0.0
    %631 = vmatprep.subr.mxu0 0.0
    %632 = vmatpush1.msra.mxu0 0.0
    %633 = vmatprep.subr.mxu0 0.0
    %634 = vmatpush1.msra.mxu0 0.0
    %635 = vmatprep.mubr.f32.mxu0 0.0
    %636 = vmatmul.mubr.f32.gmra.mrb[0].mxu0 %v373
    %v637 = vpop.f32.mrb[0].mxu0
    %v638 = vadd.f32 0.0, %v637
    %v639 = vpop.f32.mrb[0].mxu0
    %640 = vmatprep.mubr.f32.mxu0 0.0
    %641 = vmatmul.mubr.f32.gmra.mrb[0].mxu0 %v376
    %v642 = vpop.f32.mrb[0].mxu0
    %v643 = vadd.f32 0.0, %v642
    %v644 = vpop.f32.mrb[0].mxu0
    %645 = vmatprep.mubr.f32.mxu0 0.0
    %646 = vmatmul.mubr.f32.gmra.mrb[0].mxu0 %v379
    %v647 = vpop.f32.mrb[0].mxu0
    %v648 = vadd.f32 0.0, %v647
    %v649 = vpop.f32.mrb[0].mxu0
    %650 = vmatprep.mubr.f32.mxu0 0.0
    %651 = vmatmul.mubr.f32.gmra.mrb[0].mxu0 %v382
    %v652 = vpop.f32.mrb[0].mxu0
    %v653 = vadd.f32 0.0, %v652
    %v654 = vpop.f32.mrb[0].mxu0
    %655 = vmatprep.mubr.f32.mxu0 0.0
    %656 = vmatmul.mubr.f32.gmra.mrb[0].mxu0 %v385
    %v657 = vpop.f32.mrb[0].mxu0
    %v658 = vadd.f32 0.0, %v657
    %v659 = vpop.f32.mrb[0].mxu0
    %660 = vmatprep.mubr.f32.mxu0 0.0
    %661 = vmatmul.mubr.f32.gmra.mrb[0].mxu0 %v388
    %v662 = vpop.f32.mrb[0].mxu0
    %v663 = vadd.f32 0.0, %v662
    %v664 = vpop.f32.mrb[0].mxu0
    %665 = vmatprep.mubr.f32.mxu0 0.0
    %666 = vmatmul.mubr.f32.gmra.mrb[0].mxu0 %v391
    %v667 = vpop.f32.mrb[0].mxu0
    %v668 = vadd.f32 0.0, %v667
    %v669 = vpop.f32.mrb[0].mxu0
    %670 = vmatprep.mubr.f32.mxu0 0.0
    %671 = vmatmul.mubr.f32.gmra.mrb[0].mxu0 %v394
    %v672 = vpop.f32.mrb[0].mxu0
    %v673 = vadd.f32 0.0, %v672
    %v674 = vpop.f32.mrb[0].mxu0
    %675 = vmatprep.mubr.f32.mxu0 0.0
    %676 = vmatmul.mubr.f32.gmra.mrb[0].mxu0 %v397
    %v677 = vpop.f32.mrb[0].mxu0
    %v678 = vadd.f32 0.0, %v677
    %v679 = vpop.f32.mrb[0].mxu0
    %680 = vmatprep.mubr.f32.mxu0 0.0
    %681 = vmatmul.mubr.f32.gmra.mrb[0].mxu0 %v400
    %v682 = vpop.f32.mrb[0].mxu0
    %v683 = vadd.f32 0.0, %v682
    %v684 = vpop.f32.mrb[0].mxu0
    %685 = vmatprep.mubr.f32.mxu0 0.0
    %686 = vmatmul.mubr.f32.gmra.mrb[0].mxu0 %v403
    %v687 = vpop.f32.mrb[0].mxu0
    %v688 = vadd.f32 0.0, %v687
    %v689 = vpop.f32.mrb[0].mxu0
    %690 = vmatprep.mubr.f32.mxu0 0.0
    %691 = vmatmul.mubr.f32.gmra.mrb[0].mxu0 %v406
    %v692 = vpop.f32.mrb[0].mxu0
    %v693 = vadd.f32 0.0, %v692
    %v694 = vpop.f32.mrb[0].mxu0
    %695 = vmatprep.mubr.f32.mxu0 0.0
    %696 = vmatmul.mubr.f32.gmra.mrb[0].mxu0 %v409
    %v697 = vpop.f32.mrb[0].mxu0
    %v698 = vadd.f32 0.0, %v697
    %v699 = vpop.f32.mrb[0].mxu0
    %700 = vmatprep.mubr.f32.mxu0 0.0
    %701 = vmatmul.mubr.f32.gmra.mrb[0].mxu0 %v412
    %v702 = vpop.f32.mrb[0].mxu0
    %v703 = vadd.f32 0.0, %v702
    %v704 = vpop.f32.mrb[0].mxu0
    %705 = vmatprep.mubr.f32.mxu0 0.0
    %706 = vmatmul.mubr.f32.gmra.mrb[0].mxu0 %v415
    %v707 = vpop.f32.mrb[0].mxu0
    %v708 = vadd.f32 0.0, %v707
    %v709 = vpop.f32.mrb[0].mxu0
    %710 = vmatprep.mubr.f32.mxu0 0.0
    %711 = vmatmul.mubr.f32.gmra.mrb[0].mxu0 %v418
    %v712 = vpop.f32.mrb[0].mxu0
    %v713 = vadd.f32 0.0, %v712
    %v714 = vpop.f32.mrb[0].mxu0
    %715 = vdwg.mxu0
    %v716 = vmul.f32 %v55, %v490
    %v717 = vmul.f32 %v56, %v495
    %v718 = vmul.f32 %v57, %v500
    %v719 = vmul.f32 %v58, %v505
    %v720 = vmul.f32 %v59, %v510
    %v721 = vmul.f32 %v60, %v515
    %v722 = vmul.f32 %v61, %v520
    %v723 = vmul.f32 %v62, %v525
    %v724 = vmul.f32 %v63, %v530
    %v725 = vmul.f32 %v64, %v535
    %v726 = vmul.f32 %v65, %v540
    %v727 = vmul.f32 %v66, %v545
    %v728 = vmul.f32 %v67, %v550
    %v729 = vmul.f32 %v68, %v555
    %v730 = vmul.f32 %v69, %v560
    %v731 = vmul.f32 %v70, %v565
    %v732 = vadd.f32 %v716, %v638
    %v733 = vadd.f32 %v717, %v643
    %v734 = vadd.f32 %v718, %v648
    %v735 = vadd.f32 %v719, %v653
    %v736 = vadd.f32 %v720, %v658
    %v737 = vadd.f32 %v721, %v663
    %v738 = vadd.f32 %v722, %v668
    %v739 = vadd.f32 %v723, %v673
    %v740 = vadd.f32 %v724, %v678
    %v741 = vadd.f32 %v725, %v683
    %v742 = vadd.f32 %v726, %v688
    %v743 = vadd.f32 %v727, %v693
    %v744 = vadd.f32 %v728, %v698
    %v745 = vadd.f32 %v729, %v703
    %v746 = vadd.f32 %v730, %v708
    %v747 = vadd.f32 %v731, %v713
    %v748 = vld [vmem:[%s1] sm:$0xff]
    %v749 = vld [vmem:[%s1 + $0x8] sm:$0xff]
    %v750 = vld [vmem:[%s1 + $0x10] sm:$0xff]
    %v751 = vld [vmem:[%s1 + $0x18] sm:$0xff]
    %v752 = vld [vmem:[%s1 + $0x20] sm:$0xff]
    %v753 = vld [vmem:[%s1 + $0x28] sm:$0xff]
    %v754 = vld [vmem:[%s1 + $0x30] sm:$0xff]
    %v755 = vld [vmem:[%s1 + $0x38] sm:$0xff]
    %v756 = vld [vmem:[%s1 + $0x40] sm:$0xff]
    %v757 = vld [vmem:[%s1 + $0x48] sm:$0xff]
    %v758 = vld [vmem:[%s1 + $0x50] sm:$0xff]
    %v759 = vld [vmem:[%s1 + $0x58] sm:$0xff]
    %v760 = vld [vmem:[%s1 + $0x60] sm:$0xff]
    %v761 = vld [vmem:[%s1 + $0x68] sm:$0xff]
    %v762 = vld [vmem:[%s1 + $0x70] sm:$0xff]
    %v763 = vld [vmem:[%s1 + $0x78] sm:$0xff]
    %v764 = vld [vmem:[%s6] sm:$0xff]
    %v765 = vld [vmem:[%s6 + $0x8] sm:$0xff]
    %v766 = vld [vmem:[%s6 + $0x10] sm:$0xff]
    %v767 = vld [vmem:[%s6 + $0x18] sm:$0xff]
    %v768 = vld [vmem:[%s6 + $0x20] sm:$0xff]
    %v769 = vld [vmem:[%s6 + $0x28] sm:$0xff]
    %v770 = vld [vmem:[%s7] sm:$0x3]
    %v772 = vlaneseq
    %v773 = vshrl.u32 %v772, 7
    %v774 = vsub.s32 0, %v773
    %v775 = vrot.slane %v770, %v774
    %v776 = vlaneseq
    %v777 = vshrl.u32 %v776, 7
    %v778 = vsub.s32 1, %v777
    %v779 = vrot.slane %v770, %v778
    %vm782 = vcmask 195584
    %v784 = vsel %vm782, %v748, 0
    %v787 = vsel %vm782, %v749, 0
    %v790 = vsel %vm782, %v750, 0
    %v793 = vsel %vm782, %v751, 0
    %v796 = vsel %vm782, %v752, 0
    %v799 = vsel %vm782, %v753, 0
    %v802 = vsel %vm782, %v754, 0
    %v805 = vsel %vm782, %v755, 0
    %v808 = vsel %vm782, %v756, 0
    %v811 = vsel %vm782, %v757, 0
    %v814 = vsel %vm782, %v758, 0
    %v817 = vsel %vm782, %v759, 0
    %v820 = vsel %vm782, %v760, 0
    %v823 = vsel %vm782, %v761, 0
    %v826 = vsel %vm782, %v762, 0
    %v829 = vsel %vm782, %v763, 0
    %831 = vmatprep.subr.mxu0 %v765
    %832 = vmatpush1.msra.mxu0 %v764
    %833 = vmatprep.subr.mxu0 %v767
    %834 = vmatpush1.msra.mxu0 %v766
    %835 = vmatprep.subr.mxu0 %v769
    %836 = vmatpush1.msra.mxu0 %v768
    %837 = vmatprep.subr.mxu0 0.0
    %838 = vmatpush1.msra.mxu0 0.0
    %839 = vmatprep.subr.mxu0 0.0
    %840 = vmatpush1.msra.mxu0 0.0
    %841 = vmatprep.subr.mxu0 0.0
    %842 = vmatpush1.msra.mxu0 0.0
    %843 = vmatprep.subr.mxu0 0.0
    %844 = vmatpush1.msra.mxu0 0.0
    %845 = vmatprep.subr.mxu0 0.0
    %846 = vmatpush1.msra.mxu0 0.0
    %847 = vmatprep.subr.mxu0 0.0
    %848 = vmatpush1.msra.mxu0 0.0
    %849 = vmatprep.subr.mxu0 0.0
    %850 = vmatpush1.msra.mxu0 0.0
    %851 = vmatprep.subr.mxu0 0.0
    %852 = vmatpush1.msra.mxu0 0.0
    %853 = vmatprep.subr.mxu0 0.0
    %854 = vmatpush1.msra.mxu0 0.0
    %855 = vmatprep.subr.mxu0 0.0
    %856 = vmatpush1.msra.mxu0 0.0
    %857 = vmatprep.subr.mxu0 0.0
    %858 = vmatpush1.msra.mxu0 0.0
    %859 = vmatprep.subr.mxu0 0.0
    %860 = vmatpush1.msra.mxu0 0.0
    %861 = vmatprep.subr.mxu0 0.0
    %862 = vmatpush1.msra.mxu0 0.0
    %863 = vmatprep.subr.mxu0 0.0
    %864 = vmatpush1.msra.mxu0 0.0
    %865 = vmatprep.subr.mxu0 0.0
    %866 = vmatpush1.msra.mxu0 0.0
    %867 = vmatprep.subr.mxu0 0.0
    %868 = vmatpush1.msra.mxu0 0.0
    %869 = vmatprep.subr.mxu0 0.0
    %870 = vmatpush1.msra.mxu0 0.0
    %871 = vmatprep.subr.mxu0 0.0
    %872 = vmatpush1.msra.mxu0 0.0
    %873 = vmatprep.subr.mxu0 0.0
    %874 = vmatpush1.msra.mxu0 0.0
    %875 = vmatprep.subr.mxu0 0.0
    %876 = vmatpush1.msra.mxu0 0.0
    %877 = vmatprep.subr.mxu0 0.0
    %878 = vmatpush1.msra.mxu0 0.0
    %879 = vmatprep.subr.mxu0 0.0
    %880 = vmatpush1.msra.mxu0 0.0
    %881 = vmatprep.subr.mxu0 0.0
    %882 = vmatpush1.msra.mxu0 0.0
    %883 = vmatprep.subr.mxu0 0.0
    %884 = vmatpush1.msra.mxu0 0.0
    %885 = vmatprep.subr.mxu0 0.0
    %886 = vmatpush1.msra.mxu0 0.0
    %887 = vmatprep.subr.mxu0 0.0
    %888 = vmatpush1.msra.mxu0 0.0
    %889 = vmatprep.subr.mxu0 0.0
    %890 = vmatpush1.msra.mxu0 0.0
    %891 = vmatprep.subr.mxu0 0.0
    %892 = vmatpush1.msra.mxu0 0.0
    %893 = vmatprep.subr.mxu0 0.0
    %894 = vmatpush1.msra.mxu0 0.0
    %895 = vmatprep.mubr.f32.mxu0 0.0
    %896 = vmatmul.mubr.f32.gmra.mrb[0].mxu0 %v784
    %v897 = vpop.f32.mrb[0].mxu0
    %v898 = vadd.f32 %v775, %v897
    %v899 = vpop.f32.mrb[0].mxu0
    %v900 = vadd.f32 %v779, %v899
    %901 = vmatprep.mubr.f32.mxu0 0.0
    %902 = vmatmul.mubr.f32.gmra.mrb[0].mxu0 %v787
    %v903 = vpop.f32.mrb[0].mxu0
    %v904 = vadd.f32 %v775, %v903
    %v905 = vpop.f32.mrb[0].mxu0
    %v906 = vadd.f32 %v779, %v905
    %907 = vmatprep.mubr.f32.mxu0 0.0
    %908 = vmatmul.mubr.f32.gmra.mrb[0].mxu0 %v790
    %v909 = vpop.f32.mrb[0].mxu0
    %v910 = vadd.f32 %v775, %v909
    %v911 = vpop.f32.mrb[0].mxu0
    %v912 = vadd.f32 %v779, %v911
    %913 = vmatprep.mubr.f32.mxu0 0.0
    %914 = vmatmul.mubr.f32.gmra.mrb[0].mxu0 %v793
    %v915 = vpop.f32.mrb[0].mxu0
    %v916 = vadd.f32 %v775, %v915
    %v917 = vpop.f32.mrb[0].mxu0
    %v918 = vadd.f32 %v779, %v917
    %919 = vmatprep.mubr.f32.mxu0 0.0
    %920 = vmatmul.mubr.f32.gmra.mrb[0].mxu0 %v796
    %v921 = vpop.f32.mrb[0].mxu0
    %v922 = vadd.f32 %v775, %v921
    %v923 = vpop.f32.mrb[0].mxu0
    %v924 = vadd.f32 %v779, %v923
    %925 = vmatprep.mubr.f32.mxu0 0.0
    %926 = vmatmul.mubr.f32.gmra.mrb[0].mxu0 %v799
    %v927 = vpop.f32.mrb[0].mxu0
    %v928 = vadd.f32 %v775, %v927
    %v929 = vpop.f32.mrb[0].mxu0
    %v930 = vadd.f32 %v779, %v929
    %931 = vmatprep.mubr.f32.mxu0 0.0
    %932 = vmatmul.mubr.f32.gmra.mrb[0].mxu0 %v802
    %v933 = vpop.f32.mrb[0].mxu0
    %v934 = vadd.f32 %v775, %v933
    %v935 = vpop.f32.mrb[0].mxu0
    %v936 = vadd.f32 %v779, %v935
    %937 = vmatprep.mubr.f32.mxu0 0.0
    %938 = vmatmul.mubr.f32.gmra.mrb[0].mxu0 %v805
    %v939 = vpop.f32.mrb[0].mxu0
    %v940 = vadd.f32 %v775, %v939
    %v941 = vpop.f32.mrb[0].mxu0
    %v942 = vadd.f32 %v779, %v941
    %943 = vmatprep.mubr.f32.mxu0 0.0
    %944 = vmatmul.mubr.f32.gmra.mrb[0].mxu0 %v808
    %v945 = vpop.f32.mrb[0].mxu0
    %v946 = vadd.f32 %v775, %v945
    %v947 = vpop.f32.mrb[0].mxu0
    %v948 = vadd.f32 %v779, %v947
    %949 = vmatprep.mubr.f32.mxu0 0.0
    %950 = vmatmul.mubr.f32.gmra.mrb[0].mxu0 %v811
    %v951 = vpop.f32.mrb[0].mxu0
    %v952 = vadd.f32 %v775, %v951
    %v953 = vpop.f32.mrb[0].mxu0
    %v954 = vadd.f32 %v779, %v953
    %955 = vmatprep.mubr.f32.mxu0 0.0
    %956 = vmatmul.mubr.f32.gmra.mrb[0].mxu0 %v814
    %v957 = vpop.f32.mrb[0].mxu0
    %v958 = vadd.f32 %v775, %v957
    %v959 = vpop.f32.mrb[0].mxu0
    %v960 = vadd.f32 %v779, %v959
    %961 = vmatprep.mubr.f32.mxu0 0.0
    %962 = vmatmul.mubr.f32.gmra.mrb[0].mxu0 %v817
    %v963 = vpop.f32.mrb[0].mxu0
    %v964 = vadd.f32 %v775, %v963
    %v965 = vpop.f32.mrb[0].mxu0
    %v966 = vadd.f32 %v779, %v965
    %967 = vmatprep.mubr.f32.mxu0 0.0
    %968 = vmatmul.mubr.f32.gmra.mrb[0].mxu0 %v820
    %v969 = vpop.f32.mrb[0].mxu0
    %v970 = vadd.f32 %v775, %v969
    %v971 = vpop.f32.mrb[0].mxu0
    %v972 = vadd.f32 %v779, %v971
    %973 = vmatprep.mubr.f32.mxu0 0.0
    %974 = vmatmul.mubr.f32.gmra.mrb[0].mxu0 %v823
    %v975 = vpop.f32.mrb[0].mxu0
    %v976 = vadd.f32 %v775, %v975
    %v977 = vpop.f32.mrb[0].mxu0
    %v978 = vadd.f32 %v779, %v977
    %979 = vmatprep.mubr.f32.mxu0 0.0
    %980 = vmatmul.mubr.f32.gmra.mrb[0].mxu0 %v826
    %v981 = vpop.f32.mrb[0].mxu0
    %v982 = vadd.f32 %v775, %v981
    %v983 = vpop.f32.mrb[0].mxu0
    %v984 = vadd.f32 %v779, %v983
    %985 = vmatprep.mubr.f32.mxu0 0.0
    %986 = vmatmul.mubr.f32.gmra.mrb[0].mxu0 %v829
    %v987 = vpop.f32.mrb[0].mxu0
    %v988 = vadd.f32 %v775, %v987
    %v989 = vpop.f32.mrb[0].mxu0
    %v990 = vadd.f32 %v779, %v989
    %991 = vdwg.mxu0
    %v992 = vxor.u32 %v898, 2147483648
    %v993 = vxor.u32 %v900, 2147483648
    %v994 = vxor.u32 %v904, 2147483648
    %v995 = vxor.u32 %v906, 2147483648
    %v996 = vxor.u32 %v910, 2147483648
    %v997 = vxor.u32 %v912, 2147483648
    %v998 = vxor.u32 %v916, 2147483648
    %v999 = vxor.u32 %v918, 2147483648
    %v1000 = vxor.u32 %v922, 2147483648
    %v1001 = vxor.u32 %v924, 2147483648
    %v1002 = vxor.u32 %v928, 2147483648
    %v1003 = vxor.u32 %v930, 2147483648
    %v1004 = vxor.u32 %v934, 2147483648
    %v1005 = vxor.u32 %v936, 2147483648
    %v1006 = vxor.u32 %v940, 2147483648
    %v1007 = vxor.u32 %v942, 2147483648
    %v1008 = vxor.u32 %v946, 2147483648
    %v1009 = vxor.u32 %v948, 2147483648
    %v1010 = vxor.u32 %v952, 2147483648
    %v1011 = vxor.u32 %v954, 2147483648
    %v1012 = vxor.u32 %v958, 2147483648
    %v1013 = vxor.u32 %v960, 2147483648
    %v1014 = vxor.u32 %v964, 2147483648
    %v1015 = vxor.u32 %v966, 2147483648
    %v1016 = vxor.u32 %v970, 2147483648
    %v1017 = vxor.u32 %v972, 2147483648
    %v1018 = vxor.u32 %v976, 2147483648
    %v1019 = vxor.u32 %v978, 2147483648
    %v1020 = vxor.u32 %v982, 2147483648
    %v1021 = vxor.u32 %v984, 2147483648
    %v1022 = vxor.u32 %v988, 2147483648
    %v1023 = vxor.u32 %v990, 2147483648
    %v1024 = vmul.f32 %v992, 1.442695
    %v1025 = vpow.pop %v1024
    %v1026 = vmul.f32 %v993, 1.442695
    %v1027 = vpow.pop %v1026
    %v1028 = vmul.f32 %v994, 1.442695
    %v1029 = vpow.pop %v1028
    %v1030 = vmul.f32 %v995, 1.442695
    %v1031 = vpow.pop %v1030
    %v1032 = vmul.f32 %v996, 1.442695
    %v1033 = vpow.pop %v1032
    %v1034 = vmul.f32 %v997, 1.442695
    %v1035 = vpow.pop %v1034
    %v1036 = vmul.f32 %v998, 1.442695
    %v1037 = vpow.pop %v1036
    %v1038 = vmul.f32 %v999, 1.442695
    %v1039 = vpow.pop %v1038
    %v1040 = vmul.f32 %v1000, 1.442695
    %v1041 = vpow.pop %v1040
    %v1042 = vmul.f32 %v1001, 1.442695
    %v1043 = vpow.pop %v1042
    %v1044 = vmul.f32 %v1002, 1.442695
    %v1045 = vpow.pop %v1044
    %v1046 = vmul.f32 %v1003, 1.442695
    %v1047 = vpow.pop %v1046
    %v1048 = vmul.f32 %v1004, 1.442695
    %v1049 = vpow.pop %v1048
    %v1050 = vmul.f32 %v1005, 1.442695
    %v1051 = vpow.pop %v1050
    %v1052 = vmul.f32 %v1006, 1.442695
    %v1053 = vpow.pop %v1052
    %v1054 = vmul.f32 %v1007, 1.442695
    %v1055 = vpow.pop %v1054
    %v1056 = vmul.f32 %v1008, 1.442695
    %v1057 = vpow.pop %v1056
    %v1058 = vmul.f32 %v1009, 1.442695
    %v1059 = vpow.pop %v1058
    %v1060 = vmul.f32 %v1010, 1.442695
    %v1061 = vpow.pop %v1060
    %v1062 = vmul.f32 %v1011, 1.442695
    %v1063 = vpow.pop %v1062
    %v1064 = vmul.f32 %v1012, 1.442695
    %v1065 = vpow.pop %v1064
    %v1066 = vmul.f32 %v1013, 1.442695
    %v1067 = vpow.pop %v1066
    %v1068 = vmul.f32 %v1014, 1.442695
    %v1069 = vpow.pop %v1068
    %v1070 = vmul.f32 %v1015, 1.442695
    %v1071 = vpow.pop %v1070
    %v1072 = vmul.f32 %v1016, 1.442695
    %v1073 = vpow.pop %v1072
    %v1074 = vmul.f32 %v1017, 1.442695
    %v1075 = vpow.pop %v1074
    %v1076 = vmul.f32 %v1018, 1.442695
    %v1077 = vpow.pop %v1076
    %v1078 = vmul.f32 %v1019, 1.442695
    %v1079 = vpow.pop %v1078
    %v1080 = vmul.f32 %v1020, 1.442695
    %v1081 = vpow.pop %v1080
    %v1082 = vmul.f32 %v1021, 1.442695
    %v1083 = vpow.pop %v1082
    %v1084 = vmul.f32 %v1022, 1.442695
    %v1085 = vpow.pop %v1084
    %v1086 = vmul.f32 %v1023, 1.442695
    %v1087 = vpow.pop %v1086
    %v1088 = vadd.f32 %v1025, 1.0
    %v1089 = vadd.f32 %v1027, 1.0
    %v1090 = vadd.f32 %v1029, 1.0
    %v1091 = vadd.f32 %v1031, 1.0
    %v1092 = vadd.f32 %v1033, 1.0
    %v1093 = vadd.f32 %v1035, 1.0
    %v1094 = vadd.f32 %v1037, 1.0
    %v1095 = vadd.f32 %v1039, 1.0
    %v1096 = vadd.f32 %v1041, 1.0
    %v1097 = vadd.f32 %v1043, 1.0
    %v1098 = vadd.f32 %v1045, 1.0
    %v1099 = vadd.f32 %v1047, 1.0
    %v1100 = vadd.f32 %v1049, 1.0
    %v1101 = vadd.f32 %v1051, 1.0
    %v1102 = vadd.f32 %v1053, 1.0
    %v1103 = vadd.f32 %v1055, 1.0
    %v1104 = vadd.f32 %v1057, 1.0
    %v1105 = vadd.f32 %v1059, 1.0
    %v1106 = vadd.f32 %v1061, 1.0
    %v1107 = vadd.f32 %v1063, 1.0
    %v1108 = vadd.f32 %v1065, 1.0
    %v1109 = vadd.f32 %v1067, 1.0
    %v1110 = vadd.f32 %v1069, 1.0
    %v1111 = vadd.f32 %v1071, 1.0
    %v1112 = vadd.f32 %v1073, 1.0
    %v1113 = vadd.f32 %v1075, 1.0
    %v1114 = vadd.f32 %v1077, 1.0
    %v1115 = vadd.f32 %v1079, 1.0
    %v1116 = vadd.f32 %v1081, 1.0
    %v1117 = vadd.f32 %v1083, 1.0
    %v1118 = vadd.f32 %v1085, 1.0
    %v1119 = vadd.f32 %v1087, 1.0
    %v1120 = vrcp.pop %v1088
    %v1121 = vmul.f32 1.0, %v1120
    %v1122 = vrcp.pop %v1089
    %v1123 = vmul.f32 1.0, %v1122
    %v1124 = vrcp.pop %v1090
    %v1125 = vmul.f32 1.0, %v1124
    %v1126 = vrcp.pop %v1091
    %v1127 = vmul.f32 1.0, %v1126
    %v1128 = vrcp.pop %v1092
    %v1129 = vmul.f32 1.0, %v1128
    %v1130 = vrcp.pop %v1093
    %v1131 = vmul.f32 1.0, %v1130
    %v1132 = vrcp.pop %v1094
    %v1133 = vmul.f32 1.0, %v1132
    %v1134 = vrcp.pop %v1095
    %v1135 = vmul.f32 1.0, %v1134
    %v1136 = vrcp.pop %v1096
    %v1137 = vmul.f32 1.0, %v1136
    %v1138 = vrcp.pop %v1097
    %v1139 = vmul.f32 1.0, %v1138
    %v1140 = vrcp.pop %v1098
    %v1141 = vmul.f32 1.0, %v1140
    %v1142 = vrcp.pop %v1099
    %v1143 = vmul.f32 1.0, %v1142
    %v1144 = vrcp.pop %v1100
    %v1145 = vmul.f32 1.0, %v1144
    %v1146 = vrcp.pop %v1101
    %v1147 = vmul.f32 1.0, %v1146
    %v1148 = vrcp.pop %v1102
    %v1149 = vmul.f32 1.0, %v1148
    %v1150 = vrcp.pop %v1103
    %v1151 = vmul.f32 1.0, %v1150
    %v1152 = vrcp.pop %v1104
    %v1153 = vmul.f32 1.0, %v1152
    %v1154 = vrcp.pop %v1105
    %v1155 = vmul.f32 1.0, %v1154
    %v1156 = vrcp.pop %v1106
    %v1157 = vmul.f32 1.0, %v1156
    %v1158 = vrcp.pop %v1107
    %v1159 = vmul.f32 1.0, %v1158
    %v1160 = vrcp.pop %v1108
    %v1161 = vmul.f32 1.0, %v1160
    %v1162 = vrcp.pop %v1109
    %v1163 = vmul.f32 1.0, %v1162
    %v1164 = vrcp.pop %v1110
    %v1165 = vmul.f32 1.0, %v1164
    %v1166 = vrcp.pop %v1111
    %v1167 = vmul.f32 1.0, %v1166
    %v1168 = vrcp.pop %v1112
    %v1169 = vmul.f32 1.0, %v1168
    %v1170 = vrcp.pop %v1113
    %v1171 = vmul.f32 1.0, %v1170
    %v1172 = vrcp.pop %v1114
    %v1173 = vmul.f32 1.0, %v1172
    %v1174 = vrcp.pop %v1115
    %v1175 = vmul.f32 1.0, %v1174
    %v1176 = vrcp.pop %v1116
    %v1177 = vmul.f32 1.0, %v1176
    %v1178 = vrcp.pop %v1117
    %v1179 = vmul.f32 1.0, %v1178
    %v1180 = vrcp.pop %v1118
    %v1181 = vmul.f32 1.0, %v1180
    %v1182 = vrcp.pop %v1119
    %v1183 = vmul.f32 1.0, %v1182
    %v1184 = vmul.f32 %v898, %v1121
    %v1185 = vmul.f32 %v900, %v1123
    %v1186 = vmul.f32 %v904, %v1125
    %v1187 = vmul.f32 %v906, %v1127
    %v1188 = vmul.f32 %v910, %v1129
    %v1189 = vmul.f32 %v912, %v1131
    %v1190 = vmul.f32 %v916, %v1133
    %v1191 = vmul.f32 %v918, %v1135
    %v1192 = vmul.f32 %v922, %v1137
    %v1193 = vmul.f32 %v924, %v1139
    %v1194 = vmul.f32 %v928, %v1141
    %v1195 = vmul.f32 %v930, %v1143
    %v1196 = vmul.f32 %v934, %v1145
    %v1197 = vmul.f32 %v936, %v1147
    %v1198 = vmul.f32 %v940, %v1149
    %v1199 = vmul.f32 %v942, %v1151
    %v1200 = vmul.f32 %v946, %v1153
    %v1201 = vmul.f32 %v948, %v1155
    %v1202 = vmul.f32 %v952, %v1157
    %v1203 = vmul.f32 %v954, %v1159
    %v1204 = vmul.f32 %v958, %v1161
    %v1205 = vmul.f32 %v960, %v1163
    %v1206 = vmul.f32 %v964, %v1165
    %v1207 = vmul.f32 %v966, %v1167
    %v1208 = vmul.f32 %v970, %v1169
    %v1209 = vmul.f32 %v972, %v1171
    %v1210 = vmul.f32 %v976, %v1173
    %v1211 = vmul.f32 %v978, %v1175
    %v1212 = vmul.f32 %v982, %v1177
    %v1213 = vmul.f32 %v984, %v1179
    %v1214 = vmul.f32 %v988, %v1181
    %v1215 = vmul.f32 %v990, %v1183
    %v1216 = vpack.c.bf16 %v1186, %v1184
    %v1217 = vpack.c.bf16 %v1187, %v1185
    %v1218 = vpack.c.bf16 %v1190, %v1188
    %v1219 = vpack.c.bf16 %v1191, %v1189
    %v1220 = vpack.c.bf16 %v1194, %v1192
    %v1221 = vpack.c.bf16 %v1195, %v1193
    %v1222 = vpack.c.bf16 %v1198, %v1196
    %v1223 = vpack.c.bf16 %v1199, %v1197
    %v1224 = vpack.c.bf16 %v1202, %v1200
    %v1225 = vpack.c.bf16 %v1203, %v1201
    %v1226 = vpack.c.bf16 %v1206, %v1204
    %v1227 = vpack.c.bf16 %v1207, %v1205
    %v1228 = vpack.c.bf16 %v1210, %v1208
    %v1229 = vpack.c.bf16 %v1211, %v1209
    %v1230 = vpack.c.bf16 %v1214, %v1212
    %v1231 = vpack.c.bf16 %v1215, %v1213
    %v1232 = vld [vmem:[%s8] sm:$0xff]
    %v1233 = vld [vmem:[%s8 + $0x8] sm:$0xff]
    %v1234 = vld [vmem:[%s8 + $0x10] sm:$0xff]
    %v1235 = vld [vmem:[%s8 + $0x18] sm:$0xff]
    %v1236 = vld [vmem:[%s8 + $0x20] sm:$0xff]
    %v1237 = vld [vmem:[%s8 + $0x28] sm:$0xff]
    %v1238 = vld [vmem:[%s8 + $0x30] sm:$0xff]
    %v1239 = vld [vmem:[%s8 + $0x38] sm:$0xff]
    %v1240 = vld [vmem:[%s8 + $0x40] sm:$0xff]
    %v1241 = vld [vmem:[%s8 + $0x48] sm:$0xff]
    %v1242 = vld [vmem:[%s8 + $0x50] sm:$0xff]
    %v1243 = vld [vmem:[%s8 + $0x58] sm:$0xff]
    %v1244 = vld [vmem:[%s8 + $0x60] sm:$0xff]
    %v1245 = vld [vmem:[%s8 + $0x68] sm:$0xff]
    %v1246 = vld [vmem:[%s8 + $0x70] sm:$0xff]
    %v1247 = vld [vmem:[%s8 + $0x78] sm:$0xff]
    %v1248 = vld [vmem:[%s8 + $0x80] sm:$0xff]
    %v1249 = vld [vmem:[%s8 + $0x88] sm:$0xff]
    %v1250 = vld [vmem:[%s8 + $0x90] sm:$0xff]
    %v1251 = vld [vmem:[%s8 + $0x98] sm:$0xff]
    %v1252 = vld [vmem:[%s8 + $0xa0] sm:$0xff]
    %v1253 = vld [vmem:[%s8 + $0xa8] sm:$0xff]
    %v1254 = vld [vmem:[%s8 + $0xb0] sm:$0xff]
    %v1255 = vld [vmem:[%s8 + $0xb8] sm:$0xff]
    %v1256 = vld [vmem:[%s8 + $0xc0] sm:$0xff]
    %v1257 = vld [vmem:[%s8 + $0xc8] sm:$0xff]
    %v1258 = vld [vmem:[%s8 + $0xd0] sm:$0xff]
    %v1259 = vld [vmem:[%s8 + $0xd8] sm:$0xff]
    %v1260 = vld [vmem:[%s8 + $0xe0] sm:$0xff]
    %v1261 = vld [vmem:[%s8 + $0xe8] sm:$0xff]
    %v1262 = vld [vmem:[%s8 + $0xf0] sm:$0xff]
    %v1263 = vld [vmem:[%s8 + $0xf8] sm:$0xff]
    %v1264 = vld [vmem:[%s9] sm:$0x3]
    %v1266 = vlaneseq
    %v1267 = vshrl.u32 %v1266, 7
    %v1268 = vsub.s32 0, %v1267
    %v1269 = vrot.slane %v1264, %v1268
    %v1270 = vlaneseq
    %v1271 = vshrl.u32 %v1270, 7
    %v1272 = vsub.s32 1, %v1271
    %v1273 = vrot.slane %v1264, %v1272
    %v1308 = vunpack.c.l.b16 %v1232
    %v1309 = vunpack.c.h.b16 %v1232
    %v1310 = vunpack.c.l.b16 %v1233
    %v1311 = vunpack.c.h.b16 %v1233
    %v1312 = vunpack.c.l.b16 %v1234
    %v1313 = vunpack.c.h.b16 %v1234
    %v1314 = vunpack.c.l.b16 %v1235
    %v1315 = vunpack.c.h.b16 %v1235
    %v1316 = vunpack.c.l.b16 %v1236
    %v1317 = vunpack.c.h.b16 %v1236
    %v1318 = vunpack.c.l.b16 %v1237
    %v1319 = vunpack.c.h.b16 %v1237
    %v1320 = vunpack.c.l.b16 %v1238
    %v1321 = vunpack.c.h.b16 %v1238
    %v1322 = vunpack.c.l.b16 %v1239
    %v1323 = vunpack.c.h.b16 %v1239
    %v1324 = vunpack.c.l.b16 %v1240
    %v1325 = vunpack.c.h.b16 %v1240
    %v1326 = vunpack.c.l.b16 %v1241
    %v1327 = vunpack.c.h.b16 %v1241
    %v1328 = vunpack.c.l.b16 %v1242
    %v1329 = vunpack.c.h.b16 %v1242
    %v1330 = vunpack.c.l.b16 %v1243
    %v1331 = vunpack.c.h.b16 %v1243
    %v1332 = vunpack.c.l.b16 %v1244
    %v1333 = vunpack.c.h.b16 %v1244
    %v1334 = vunpack.c.l.b16 %v1245
    %v1335 = vunpack.c.h.b16 %v1245
    %v1336 = vunpack.c.l.b16 %v1246
    %v1337 = vunpack.c.h.b16 %v1246
    %v1338 = vunpack.c.l.b16 %v1247
    %v1339 = vunpack.c.h.b16 %v1247
    %v1340 = vunpack.c.l.b16 %v1248
    %v1341 = vunpack.c.h.b16 %v1248
    %v1342 = vunpack.c.l.b16 %v1249
    %v1343 = vunpack.c.h.b16 %v1249
    %v1344 = vunpack.c.l.b16 %v1250
    %v1345 = vunpack.c.h.b16 %v1250
    %v1346 = vunpack.c.l.b16 %v1251
    %v1347 = vunpack.c.h.b16 %v1251
    %v1348 = vunpack.c.l.b16 %v1252
    %v1349 = vunpack.c.h.b16 %v1252
    %v1350 = vunpack.c.l.b16 %v1253
    %v1351 = vunpack.c.h.b16 %v1253
    %v1352 = vunpack.c.l.b16 %v1254
    %v1353 = vunpack.c.h.b16 %v1254
    %v1354 = vunpack.c.l.b16 %v1255
    %v1355 = vunpack.c.h.b16 %v1255
    %v1356 = vunpack.c.l.b16 %v1256
    %v1357 = vunpack.c.h.b16 %v1256
    %v1358 = vunpack.c.l.b16 %v1257
    %v1359 = vunpack.c.h.b16 %v1257
    %v1360 = vunpack.c.l.b16 %v1258
    %v1361 = vunpack.c.h.b16 %v1258
    %v1362 = vunpack.c.l.b16 %v1259
    %v1363 = vunpack.c.h.b16 %v1259
    %v1364 = vunpack.c.l.b16 %v1260
    %v1365 = vunpack.c.h.b16 %v1260
    %v1366 = vunpack.c.l.b16 %v1261
    %v1367 = vunpack.c.h.b16 %v1261
    %v1368 = vunpack.c.l.b16 %v1262
    %v1369 = vunpack.c.h.b16 %v1262
    %v1370 = vunpack.c.l.b16 %v1263
    %v1371 = vunpack.c.h.b16 %v1263
    %v1372 = vpack.c.b16 %v1310, %v1308
    %v1373 = vpack.c.b16 %v1311, %v1309
    %v1374 = vpack.c.b16 %v1314, %v1312
    %v1375 = vpack.c.b16 %v1315, %v1313
    %v1376 = vpack.c.b16 %v1318, %v1316
    %v1377 = vpack.c.b16 %v1319, %v1317
    %v1378 = vpack.c.b16 %v1322, %v1320
    %v1379 = vpack.c.b16 %v1323, %v1321
    %v1380 = vpack.c.b16 %v1326, %v1324
    %v1381 = vpack.c.b16 %v1327, %v1325
    %v1382 = vpack.c.b16 %v1330, %v1328
    %v1383 = vpack.c.b16 %v1331, %v1329
    %v1384 = vpack.c.b16 %v1334, %v1332
    %v1385 = vpack.c.b16 %v1335, %v1333
    %v1386 = vpack.c.b16 %v1338, %v1336
    %v1387 = vpack.c.b16 %v1339, %v1337
    %v1388 = vpack.c.b16 %v1342, %v1340
    %v1389 = vpack.c.b16 %v1343, %v1341
    %v1390 = vpack.c.b16 %v1346, %v1344
    %v1391 = vpack.c.b16 %v1347, %v1345
    %v1392 = vpack.c.b16 %v1350, %v1348
    %v1393 = vpack.c.b16 %v1351, %v1349
    %v1394 = vpack.c.b16 %v1354, %v1352
    %v1395 = vpack.c.b16 %v1355, %v1353
    %v1396 = vpack.c.b16 %v1358, %v1356
    %v1397 = vpack.c.b16 %v1359, %v1357
    %v1398 = vpack.c.b16 %v1362, %v1360
    %v1399 = vpack.c.b16 %v1363, %v1361
    %v1400 = vpack.c.b16 %v1366, %v1364
    %v1401 = vpack.c.b16 %v1367, %v1365
    %v1402 = vpack.c.b16 %v1370, %v1368
    %v1403 = vpack.c.b16 %v1371, %v1369
    %1436 = vmatprep.subr.bf16.mxu0 %v1373
    %1437 = vmatpush1.bf16.msra.mxu0 %v1372
    %1438 = vmatprep.subr.bf16.mxu0 %v1375
    %1439 = vmatpush1.bf16.msra.mxu0 %v1374
    %1440 = vmatprep.subr.bf16.mxu0 %v1377
    %1441 = vmatpush1.bf16.msra.mxu0 %v1376
    %1442 = vmatprep.subr.bf16.mxu0 %v1379
    %1443 = vmatpush1.bf16.msra.mxu0 %v1378
    %1444 = vmatprep.subr.bf16.mxu0 %v1381
    %1445 = vmatpush1.bf16.msra.mxu0 %v1380
    %1446 = vmatprep.subr.bf16.mxu0 %v1383
    %1447 = vmatpush1.bf16.msra.mxu0 %v1382
    %1448 = vmatprep.subr.bf16.mxu0 %v1385
    %1449 = vmatpush1.bf16.msra.mxu0 %v1384
    %1450 = vmatprep.subr.bf16.mxu0 %v1387
    %1451 = vmatpush1.bf16.msra.mxu0 %v1386
    %1452 = vmatprep.subr.bf16.mxu0 %v1389
    %1453 = vmatpush1.bf16.msra.mxu0 %v1388
    %1454 = vmatprep.subr.bf16.mxu0 %v1391
    %1455 = vmatpush1.bf16.msra.mxu0 %v1390
    %1456 = vmatprep.subr.bf16.mxu0 %v1393
    %1457 = vmatpush1.bf16.msra.mxu0 %v1392
    %1458 = vmatprep.subr.bf16.mxu0 %v1395
    %1459 = vmatpush1.bf16.msra.mxu0 %v1394
    %1460 = vmatprep.subr.bf16.mxu0 %v1397
    %1461 = vmatpush1.bf16.msra.mxu0 %v1396
    %1462 = vmatprep.subr.bf16.mxu0 %v1399
    %1463 = vmatpush1.bf16.msra.mxu0 %v1398
    %1464 = vmatprep.subr.bf16.mxu0 %v1401
    %1465 = vmatpush1.bf16.msra.mxu0 %v1400
    %1466 = vmatprep.subr.bf16.mxu0 %v1403
    %1467 = vmatpush1.bf16.msra.mxu0 %v1402
    %1468 = vmatprep.mubr.bf16.mxu0 %v1217
    %1469 = vmatmul.mubr.bf16.gmra.mrb[0].mxu0 %v1216
    %v1470 = vpop.f32.mrb[0].mxu0
    %v1471 = vadd.f32 %v1269, %v1470
    %v1472 = vpop.f32.mrb[0].mxu0
    %v1473 = vadd.f32 %v1273, %v1472
    %v1474 = vpop.f32.mrb[0].mxu0
    %v1475 = vadd.f32 %v1269, %v1474
    %v1476 = vpop.f32.mrb[0].mxu0
    %v1477 = vadd.f32 %v1273, %v1476
    %1478 = vmatprep.mubr.bf16.mxu0 %v1219
    %1479 = vmatmul.mubr.bf16.gmra.mrb[0].mxu0 %v1218
    %v1480 = vpop.f32.mrb[0].mxu0
    %v1481 = vadd.f32 %v1269, %v1480
    %v1482 = vpop.f32.mrb[0].mxu0
    %v1483 = vadd.f32 %v1273, %v1482
    %v1484 = vpop.f32.mrb[0].mxu0
    %v1485 = vadd.f32 %v1269, %v1484
    %v1486 = vpop.f32.mrb[0].mxu0
    %v1487 = vadd.f32 %v1273, %v1486
    %1488 = vmatprep.mubr.bf16.mxu0 %v1221
    %1489 = vmatmul.mubr.bf16.gmra.mrb[0].mxu0 %v1220
    %v1490 = vpop.f32.mrb[0].mxu0
    %v1491 = vadd.f32 %v1269, %v1490
    %v1492 = vpop.f32.mrb[0].mxu0
    %v1493 = vadd.f32 %v1273, %v1492
    %v1494 = vpop.f32.mrb[0].mxu0
    %v1495 = vadd.f32 %v1269, %v1494
    %v1496 = vpop.f32.mrb[0].mxu0
    %v1497 = vadd.f32 %v1273, %v1496
    %1498 = vmatprep.mubr.bf16.mxu0 %v1223
    %1499 = vmatmul.mubr.bf16.gmra.mrb[0].mxu0 %v1222
    %v1500 = vpop.f32.mrb[0].mxu0
    %v1501 = vadd.f32 %v1269, %v1500
    %v1502 = vpop.f32.mrb[0].mxu0
    %v1503 = vadd.f32 %v1273, %v1502
    %v1504 = vpop.f32.mrb[0].mxu0
    %v1505 = vadd.f32 %v1269, %v1504
    %v1506 = vpop.f32.mrb[0].mxu0
    %v1507 = vadd.f32 %v1273, %v1506
    %1508 = vmatprep.mubr.bf16.mxu0 %v1225
    %1509 = vmatmul.mubr.bf16.gmra.mrb[0].mxu0 %v1224
    %v1510 = vpop.f32.mrb[0].mxu0
    %v1511 = vadd.f32 %v1269, %v1510
    %v1512 = vpop.f32.mrb[0].mxu0
    %v1513 = vadd.f32 %v1273, %v1512
    %v1514 = vpop.f32.mrb[0].mxu0
    %v1515 = vadd.f32 %v1269, %v1514
    %v1516 = vpop.f32.mrb[0].mxu0
    %v1517 = vadd.f32 %v1273, %v1516
    %1518 = vmatprep.mubr.bf16.mxu0 %v1227
    %1519 = vmatmul.mubr.bf16.gmra.mrb[0].mxu0 %v1226
    %v1520 = vpop.f32.mrb[0].mxu0
    %v1521 = vadd.f32 %v1269, %v1520
    %v1522 = vpop.f32.mrb[0].mxu0
    %v1523 = vadd.f32 %v1273, %v1522
    %v1524 = vpop.f32.mrb[0].mxu0
    %v1525 = vadd.f32 %v1269, %v1524
    %v1526 = vpop.f32.mrb[0].mxu0
    %v1527 = vadd.f32 %v1273, %v1526
    %1528 = vmatprep.mubr.bf16.mxu0 %v1229
    %1529 = vmatmul.mubr.bf16.gmra.mrb[0].mxu0 %v1228
    %v1530 = vpop.f32.mrb[0].mxu0
    %v1531 = vadd.f32 %v1269, %v1530
    %v1532 = vpop.f32.mrb[0].mxu0
    %v1533 = vadd.f32 %v1273, %v1532
    %v1534 = vpop.f32.mrb[0].mxu0
    %v1535 = vadd.f32 %v1269, %v1534
    %v1536 = vpop.f32.mrb[0].mxu0
    %v1537 = vadd.f32 %v1273, %v1536
    %1538 = vmatprep.mubr.bf16.mxu0 %v1231
    %1539 = vmatmul.mubr.bf16.gmra.mrb[0].mxu0 %v1230
    %v1540 = vpop.f32.mrb[0].mxu0
    %v1541 = vadd.f32 %v1269, %v1540
    %v1542 = vpop.f32.mrb[0].mxu0
    %v1543 = vadd.f32 %v1273, %v1542
    %v1544 = vpop.f32.mrb[0].mxu0
    %v1545 = vadd.f32 %v1269, %v1544
    %v1546 = vpop.f32.mrb[0].mxu0
    %v1547 = vadd.f32 %v1273, %v1546
    %1548 = vdwg.mxu0
    %v1549 = vxor.u32 %v1471, 2147483648
    %v1550 = vxor.u32 %v1473, 2147483648
    %v1551 = vxor.u32 %v1475, 2147483648
    %v1552 = vxor.u32 %v1477, 2147483648
    %v1553 = vxor.u32 %v1481, 2147483648
    %v1554 = vxor.u32 %v1483, 2147483648
    %v1555 = vxor.u32 %v1485, 2147483648
    %v1556 = vxor.u32 %v1487, 2147483648
    %v1557 = vxor.u32 %v1491, 2147483648
    %v1558 = vxor.u32 %v1493, 2147483648
    %v1559 = vxor.u32 %v1495, 2147483648
    %v1560 = vxor.u32 %v1497, 2147483648
    %v1561 = vxor.u32 %v1501, 2147483648
    %v1562 = vxor.u32 %v1503, 2147483648
    %v1563 = vxor.u32 %v1505, 2147483648
    %v1564 = vxor.u32 %v1507, 2147483648
    %v1565 = vxor.u32 %v1511, 2147483648
    %v1566 = vxor.u32 %v1513, 2147483648
    %v1567 = vxor.u32 %v1515, 2147483648
    %v1568 = vxor.u32 %v1517, 2147483648
    %v1569 = vxor.u32 %v1521, 2147483648
    %v1570 = vxor.u32 %v1523, 2147483648
    %v1571 = vxor.u32 %v1525, 2147483648
    %v1572 = vxor.u32 %v1527, 2147483648
    %v1573 = vxor.u32 %v1531, 2147483648
    %v1574 = vxor.u32 %v1533, 2147483648
    %v1575 = vxor.u32 %v1535, 2147483648
    %v1576 = vxor.u32 %v1537, 2147483648
    %v1577 = vxor.u32 %v1541, 2147483648
    %v1578 = vxor.u32 %v1543, 2147483648
    %v1579 = vxor.u32 %v1545, 2147483648
    %v1580 = vxor.u32 %v1547, 2147483648
    %v1581 = vmul.f32 %v1549, 1.442695
    %v1582 = vpow.pop %v1581
    %v1583 = vmul.f32 %v1550, 1.442695
    %v1584 = vpow.pop %v1583
    %v1585 = vmul.f32 %v1551, 1.442695
    %v1586 = vpow.pop %v1585
    %v1587 = vmul.f32 %v1552, 1.442695
    %v1588 = vpow.pop %v1587
    %v1589 = vmul.f32 %v1553, 1.442695
    %v1590 = vpow.pop %v1589
    %v1591 = vmul.f32 %v1554, 1.442695
    %v1592 = vpow.pop %v1591
    %v1593 = vmul.f32 %v1555, 1.442695
    %v1594 = vpow.pop %v1593
    %v1595 = vmul.f32 %v1556, 1.442695
    %v1596 = vpow.pop %v1595
    %v1597 = vmul.f32 %v1557, 1.442695
    %v1598 = vpow.pop %v1597
    %v1599 = vmul.f32 %v1558, 1.442695
    %v1600 = vpow.pop %v1599
    %v1601 = vmul.f32 %v1559, 1.442695
    %v1602 = vpow.pop %v1601
    %v1603 = vmul.f32 %v1560, 1.442695
    %v1604 = vpow.pop %v1603
    %v1605 = vmul.f32 %v1561, 1.442695
    %v1606 = vpow.pop %v1605
    %v1607 = vmul.f32 %v1562, 1.442695
    %v1608 = vpow.pop %v1607
    %v1609 = vmul.f32 %v1563, 1.442695
    %v1610 = vpow.pop %v1609
    %v1611 = vmul.f32 %v1564, 1.442695
    %v1612 = vpow.pop %v1611
    %v1613 = vmul.f32 %v1565, 1.442695
    %v1614 = vpow.pop %v1613
    %v1615 = vmul.f32 %v1566, 1.442695
    %v1616 = vpow.pop %v1615
    %v1617 = vmul.f32 %v1567, 1.442695
    %v1618 = vpow.pop %v1617
    %v1619 = vmul.f32 %v1568, 1.442695
    %v1620 = vpow.pop %v1619
    %v1621 = vmul.f32 %v1569, 1.442695
    %v1622 = vpow.pop %v1621
    %v1623 = vmul.f32 %v1570, 1.442695
    %v1624 = vpow.pop %v1623
    %v1625 = vmul.f32 %v1571, 1.442695
    %v1626 = vpow.pop %v1625
    %v1627 = vmul.f32 %v1572, 1.442695
    %v1628 = vpow.pop %v1627
    %v1629 = vmul.f32 %v1573, 1.442695
    %v1630 = vpow.pop %v1629
    %v1631 = vmul.f32 %v1574, 1.442695
    %v1632 = vpow.pop %v1631
    %v1633 = vmul.f32 %v1575, 1.442695
    %v1634 = vpow.pop %v1633
    %v1635 = vmul.f32 %v1576, 1.442695
    %v1636 = vpow.pop %v1635
    %v1637 = vmul.f32 %v1577, 1.442695
    %v1638 = vpow.pop %v1637
    %v1639 = vmul.f32 %v1578, 1.442695
    %v1640 = vpow.pop %v1639
    %v1641 = vmul.f32 %v1579, 1.442695
    %v1642 = vpow.pop %v1641
    %v1643 = vmul.f32 %v1580, 1.442695
    %v1644 = vpow.pop %v1643
    %v1645 = vadd.f32 %v1582, 1.0
    %v1646 = vadd.f32 %v1584, 1.0
    %v1647 = vadd.f32 %v1586, 1.0
    %v1648 = vadd.f32 %v1588, 1.0
    %v1649 = vadd.f32 %v1590, 1.0
    %v1650 = vadd.f32 %v1592, 1.0
    %v1651 = vadd.f32 %v1594, 1.0
    %v1652 = vadd.f32 %v1596, 1.0
    %v1653 = vadd.f32 %v1598, 1.0
    %v1654 = vadd.f32 %v1600, 1.0
    %v1655 = vadd.f32 %v1602, 1.0
    %v1656 = vadd.f32 %v1604, 1.0
    %v1657 = vadd.f32 %v1606, 1.0
    %v1658 = vadd.f32 %v1608, 1.0
    %v1659 = vadd.f32 %v1610, 1.0
    %v1660 = vadd.f32 %v1612, 1.0
    %v1661 = vadd.f32 %v1614, 1.0
    %v1662 = vadd.f32 %v1616, 1.0
    %v1663 = vadd.f32 %v1618, 1.0
    %v1664 = vadd.f32 %v1620, 1.0
    %v1665 = vadd.f32 %v1622, 1.0
    %v1666 = vadd.f32 %v1624, 1.0
    %v1667 = vadd.f32 %v1626, 1.0
    %v1668 = vadd.f32 %v1628, 1.0
    %v1669 = vadd.f32 %v1630, 1.0
    %v1670 = vadd.f32 %v1632, 1.0
    %v1671 = vadd.f32 %v1634, 1.0
    %v1672 = vadd.f32 %v1636, 1.0
    %v1673 = vadd.f32 %v1638, 1.0
    %v1674 = vadd.f32 %v1640, 1.0
    %v1675 = vadd.f32 %v1642, 1.0
    %v1676 = vadd.f32 %v1644, 1.0
    %v1677 = vrcp.pop %v1645
    %v1678 = vmul.f32 1.0, %v1677
    %v1679 = vrcp.pop %v1646
    %v1680 = vmul.f32 1.0, %v1679
    %v1681 = vrcp.pop %v1647
    %v1682 = vmul.f32 1.0, %v1681
    %v1683 = vrcp.pop %v1648
    %v1684 = vmul.f32 1.0, %v1683
    %v1685 = vrcp.pop %v1649
    %v1686 = vmul.f32 1.0, %v1685
    %v1687 = vrcp.pop %v1650
    %v1688 = vmul.f32 1.0, %v1687
    %v1689 = vrcp.pop %v1651
    %v1690 = vmul.f32 1.0, %v1689
    %v1691 = vrcp.pop %v1652
    %v1692 = vmul.f32 1.0, %v1691
    %v1693 = vrcp.pop %v1653
    %v1694 = vmul.f32 1.0, %v1693
    %v1695 = vrcp.pop %v1654
    %v1696 = vmul.f32 1.0, %v1695
    %v1697 = vrcp.pop %v1655
    %v1698 = vmul.f32 1.0, %v1697
    %v1699 = vrcp.pop %v1656
    %v1700 = vmul.f32 1.0, %v1699
    %v1701 = vrcp.pop %v1657
    %v1702 = vmul.f32 1.0, %v1701
    %v1703 = vrcp.pop %v1658
    %v1704 = vmul.f32 1.0, %v1703
    %v1705 = vrcp.pop %v1659
    %v1706 = vmul.f32 1.0, %v1705
    %v1707 = vrcp.pop %v1660
    %v1708 = vmul.f32 1.0, %v1707
    %v1709 = vrcp.pop %v1661
    %v1710 = vmul.f32 1.0, %v1709
    %v1711 = vrcp.pop %v1662
    %v1712 = vmul.f32 1.0, %v1711
    %v1713 = vrcp.pop %v1663
    %v1714 = vmul.f32 1.0, %v1713
    %v1715 = vrcp.pop %v1664
    %v1716 = vmul.f32 1.0, %v1715
    %v1717 = vrcp.pop %v1665
    %v1718 = vmul.f32 1.0, %v1717
    %v1719 = vrcp.pop %v1666
    %v1720 = vmul.f32 1.0, %v1719
    %v1721 = vrcp.pop %v1667
    %v1722 = vmul.f32 1.0, %v1721
    %v1723 = vrcp.pop %v1668
    %v1724 = vmul.f32 1.0, %v1723
    %v1725 = vrcp.pop %v1669
    %v1726 = vmul.f32 1.0, %v1725
    %v1727 = vrcp.pop %v1670
    %v1728 = vmul.f32 1.0, %v1727
    %v1729 = vrcp.pop %v1671
    %v1730 = vmul.f32 1.0, %v1729
    %v1731 = vrcp.pop %v1672
    %v1732 = vmul.f32 1.0, %v1731
    %v1733 = vrcp.pop %v1673
    %v1734 = vmul.f32 1.0, %v1733
    %v1735 = vrcp.pop %v1674
    %v1736 = vmul.f32 1.0, %v1735
    %v1737 = vrcp.pop %v1675
    %v1738 = vmul.f32 1.0, %v1737
    %v1739 = vrcp.pop %v1676
    %v1740 = vmul.f32 1.0, %v1739
    %v1741 = vmul.f32 %v1471, %v1678
    %v1742 = vmul.f32 %v1473, %v1680
    %v1743 = vmul.f32 %v1475, %v1682
    %v1744 = vmul.f32 %v1477, %v1684
    %v1745 = vmul.f32 %v1481, %v1686
    %v1746 = vmul.f32 %v1483, %v1688
    %v1747 = vmul.f32 %v1485, %v1690
    %v1748 = vmul.f32 %v1487, %v1692
    %v1749 = vmul.f32 %v1491, %v1694
    %v1750 = vmul.f32 %v1493, %v1696
    %v1751 = vmul.f32 %v1495, %v1698
    %v1752 = vmul.f32 %v1497, %v1700
    %v1753 = vmul.f32 %v1501, %v1702
    %v1754 = vmul.f32 %v1503, %v1704
    %v1755 = vmul.f32 %v1505, %v1706
    %v1756 = vmul.f32 %v1507, %v1708
    %v1757 = vmul.f32 %v1511, %v1710
    %v1758 = vmul.f32 %v1513, %v1712
    %v1759 = vmul.f32 %v1515, %v1714
    %v1760 = vmul.f32 %v1517, %v1716
    %v1761 = vmul.f32 %v1521, %v1718
    %v1762 = vmul.f32 %v1523, %v1720
    %v1763 = vmul.f32 %v1525, %v1722
    %v1764 = vmul.f32 %v1527, %v1724
    %v1765 = vmul.f32 %v1531, %v1726
    %v1766 = vmul.f32 %v1533, %v1728
    %v1767 = vmul.f32 %v1535, %v1730
    %v1768 = vmul.f32 %v1537, %v1732
    %v1769 = vmul.f32 %v1541, %v1734
    %v1770 = vmul.f32 %v1543, %v1736
    %v1771 = vmul.f32 %v1545, %v1738
    %v1772 = vmul.f32 %v1547, %v1740
    %v1773 = vpack.c.bf16 %v1743, %v1741
    %v1774 = vpack.c.bf16 %v1744, %v1742
    %v1775 = vpack.c.bf16 %v1747, %v1745
    %v1776 = vpack.c.bf16 %v1748, %v1746
    %v1777 = vpack.c.bf16 %v1751, %v1749
    %v1778 = vpack.c.bf16 %v1752, %v1750
    %v1779 = vpack.c.bf16 %v1755, %v1753
    %v1780 = vpack.c.bf16 %v1756, %v1754
    %v1781 = vpack.c.bf16 %v1759, %v1757
    %v1782 = vpack.c.bf16 %v1760, %v1758
    %v1783 = vpack.c.bf16 %v1763, %v1761
    %v1784 = vpack.c.bf16 %v1764, %v1762
    %v1785 = vpack.c.bf16 %v1767, %v1765
    %v1786 = vpack.c.bf16 %v1768, %v1766
    %v1787 = vpack.c.bf16 %v1771, %v1769
    %v1788 = vpack.c.bf16 %v1772, %v1770
    %v1789 = vld [vmem:[%s10] sm:$0xff]
    %v1790 = vld [vmem:[%s10 + $0x8] sm:$0xff]
    %v1791 = vld [vmem:[%s10 + $0x10] sm:$0xff]
    %v1792 = vld [vmem:[%s10 + $0x18] sm:$0xff]
    %v1793 = vld [vmem:[%s10 + $0x20] sm:$0xff]
    %v1794 = vld [vmem:[%s10 + $0x28] sm:$0xff]
    %v1795 = vld [vmem:[%s10 + $0x30] sm:$0xff]
    %v1796 = vld [vmem:[%s10 + $0x38] sm:$0xff]
    %v1797 = vld [vmem:[%s10 + $0x40] sm:$0xff]
    %v1798 = vld [vmem:[%s10 + $0x48] sm:$0xff]
    %v1799 = vld [vmem:[%s10 + $0x50] sm:$0xff]
    %v1800 = vld [vmem:[%s10 + $0x58] sm:$0xff]
    %v1801 = vld [vmem:[%s10 + $0x60] sm:$0xff]
    %v1802 = vld [vmem:[%s10 + $0x68] sm:$0xff]
    %v1803 = vld [vmem:[%s10 + $0x70] sm:$0xff]
    %v1804 = vld [vmem:[%s10 + $0x78] sm:$0xff]
    %v1805 = vld [vmem:[%s10 + $0x80] sm:$0xff]
    %v1806 = vld [vmem:[%s10 + $0x88] sm:$0xff]
    %v1807 = vld [vmem:[%s10 + $0x90] sm:$0xff]
    %v1808 = vld [vmem:[%s10 + $0x98] sm:$0xff]
    %v1809 = vld [vmem:[%s10 + $0xa0] sm:$0xff]
    %v1810 = vld [vmem:[%s10 + $0xa8] sm:$0xff]
    %v1811 = vld [vmem:[%s10 + $0xb0] sm:$0xff]
    %v1812 = vld [vmem:[%s10 + $0xb8] sm:$0xff]
    %v1813 = vld [vmem:[%s10 + $0xc0] sm:$0xff]
    %v1814 = vld [vmem:[%s10 + $0xc8] sm:$0xff]
    %v1815 = vld [vmem:[%s10 + $0xd0] sm:$0xff]
    %v1816 = vld [vmem:[%s10 + $0xd8] sm:$0xff]
    %v1817 = vld [vmem:[%s10 + $0xe0] sm:$0xff]
    %v1818 = vld [vmem:[%s10 + $0xe8] sm:$0xff]
    %v1819 = vld [vmem:[%s10 + $0xf0] sm:$0xff]
    %v1820 = vld [vmem:[%s10 + $0xf8] sm:$0xff]
    %v1821 = vld [vmem:[%s11] sm:$0x3]
    %v1823 = vlaneseq
    %v1824 = vshrl.u32 %v1823, 7
    %v1825 = vsub.s32 0, %v1824
    %v1826 = vrot.slane %v1821, %v1825
    %v1827 = vlaneseq
    %v1828 = vshrl.u32 %v1827, 7
    %v1829 = vsub.s32 1, %v1828
    %v1830 = vrot.slane %v1821, %v1829
    %v1865 = vunpack.c.l.b16 %v1789
    %v1866 = vunpack.c.h.b16 %v1789
    %v1867 = vunpack.c.l.b16 %v1790
    %v1868 = vunpack.c.h.b16 %v1790
    %v1869 = vunpack.c.l.b16 %v1791
    %v1870 = vunpack.c.h.b16 %v1791
    %v1871 = vunpack.c.l.b16 %v1792
    %v1872 = vunpack.c.h.b16 %v1792
    %v1873 = vunpack.c.l.b16 %v1793
    %v1874 = vunpack.c.h.b16 %v1793
    %v1875 = vunpack.c.l.b16 %v1794
    %v1876 = vunpack.c.h.b16 %v1794
    %v1877 = vunpack.c.l.b16 %v1795
    %v1878 = vunpack.c.h.b16 %v1795
    %v1879 = vunpack.c.l.b16 %v1796
    %v1880 = vunpack.c.h.b16 %v1796
    %v1881 = vunpack.c.l.b16 %v1797
    %v1882 = vunpack.c.h.b16 %v1797
    %v1883 = vunpack.c.l.b16 %v1798
    %v1884 = vunpack.c.h.b16 %v1798
    %v1885 = vunpack.c.l.b16 %v1799
    %v1886 = vunpack.c.h.b16 %v1799
    %v1887 = vunpack.c.l.b16 %v1800
    %v1888 = vunpack.c.h.b16 %v1800
    %v1889 = vunpack.c.l.b16 %v1801
    %v1890 = vunpack.c.h.b16 %v1801
    %v1891 = vunpack.c.l.b16 %v1802
    %v1892 = vunpack.c.h.b16 %v1802
    %v1893 = vunpack.c.l.b16 %v1803
    %v1894 = vunpack.c.h.b16 %v1803
    %v1895 = vunpack.c.l.b16 %v1804
    %v1896 = vunpack.c.h.b16 %v1804
    %v1897 = vunpack.c.l.b16 %v1805
    %v1898 = vunpack.c.h.b16 %v1805
    %v1899 = vunpack.c.l.b16 %v1806
    %v1900 = vunpack.c.h.b16 %v1806
    %v1901 = vunpack.c.l.b16 %v1807
    %v1902 = vunpack.c.h.b16 %v1807
    %v1903 = vunpack.c.l.b16 %v1808
    %v1904 = vunpack.c.h.b16 %v1808
    %v1905 = vunpack.c.l.b16 %v1809
    %v1906 = vunpack.c.h.b16 %v1809
    %v1907 = vunpack.c.l.b16 %v1810
    %v1908 = vunpack.c.h.b16 %v1810
    %v1909 = vunpack.c.l.b16 %v1811
    %v1910 = vunpack.c.h.b16 %v1811
    %v1911 = vunpack.c.l.b16 %v1812
    %v1912 = vunpack.c.h.b16 %v1812
    %v1913 = vunpack.c.l.b16 %v1813
    %v1914 = vunpack.c.h.b16 %v1813
    %v1915 = vunpack.c.l.b16 %v1814
    %v1916 = vunpack.c.h.b16 %v1814
    %v1917 = vunpack.c.l.b16 %v1815
    %v1918 = vunpack.c.h.b16 %v1815
    %v1919 = vunpack.c.l.b16 %v1816
    %v1920 = vunpack.c.h.b16 %v1816
    %v1921 = vunpack.c.l.b16 %v1817
    %v1922 = vunpack.c.h.b16 %v1817
    %v1923 = vunpack.c.l.b16 %v1818
    %v1924 = vunpack.c.h.b16 %v1818
    %v1925 = vunpack.c.l.b16 %v1819
    %v1926 = vunpack.c.h.b16 %v1819
    %v1927 = vunpack.c.l.b16 %v1820
    %v1928 = vunpack.c.h.b16 %v1820
    %v1929 = vpack.c.b16 %v1867, %v1865
    %v1930 = vpack.c.b16 %v1868, %v1866
    %v1931 = vpack.c.b16 %v1871, %v1869
    %v1932 = vpack.c.b16 %v1872, %v1870
    %v1933 = vpack.c.b16 %v1875, %v1873
    %v1934 = vpack.c.b16 %v1876, %v1874
    %v1935 = vpack.c.b16 %v1879, %v1877
    %v1936 = vpack.c.b16 %v1880, %v1878
    %v1937 = vpack.c.b16 %v1883, %v1881
    %v1938 = vpack.c.b16 %v1884, %v1882
    %v1939 = vpack.c.b16 %v1887, %v1885
    %v1940 = vpack.c.b16 %v1888, %v1886
    %v1941 = vpack.c.b16 %v1891, %v1889
    %v1942 = vpack.c.b16 %v1892, %v1890
    %v1943 = vpack.c.b16 %v1895, %v1893
    %v1944 = vpack.c.b16 %v1896, %v1894
    %v1945 = vpack.c.b16 %v1899, %v1897
    %v1946 = vpack.c.b16 %v1900, %v1898
    %v1947 = vpack.c.b16 %v1903, %v1901
    %v1948 = vpack.c.b16 %v1904, %v1902
    %v1949 = vpack.c.b16 %v1907, %v1905
    %v1950 = vpack.c.b16 %v1908, %v1906
    %v1951 = vpack.c.b16 %v1911, %v1909
    %v1952 = vpack.c.b16 %v1912, %v1910
    %v1953 = vpack.c.b16 %v1915, %v1913
    %v1954 = vpack.c.b16 %v1916, %v1914
    %v1955 = vpack.c.b16 %v1919, %v1917
    %v1956 = vpack.c.b16 %v1920, %v1918
    %v1957 = vpack.c.b16 %v1923, %v1921
    %v1958 = vpack.c.b16 %v1924, %v1922
    %v1959 = vpack.c.b16 %v1927, %v1925
    %v1960 = vpack.c.b16 %v1928, %v1926
    %1993 = vmatprep.subr.bf16.mxu0 %v1930
    %1994 = vmatpush1.bf16.msra.mxu0 %v1929
    %1995 = vmatprep.subr.bf16.mxu0 %v1932
    %1996 = vmatpush1.bf16.msra.mxu0 %v1931
    %1997 = vmatprep.subr.bf16.mxu0 %v1934
    %1998 = vmatpush1.bf16.msra.mxu0 %v1933
    %1999 = vmatprep.subr.bf16.mxu0 %v1936
    %2000 = vmatpush1.bf16.msra.mxu0 %v1935
    %2001 = vmatprep.subr.bf16.mxu0 %v1938
    %2002 = vmatpush1.bf16.msra.mxu0 %v1937
    %2003 = vmatprep.subr.bf16.mxu0 %v1940
    %2004 = vmatpush1.bf16.msra.mxu0 %v1939
    %2005 = vmatprep.subr.bf16.mxu0 %v1942
    %2006 = vmatpush1.bf16.msra.mxu0 %v1941
    %2007 = vmatprep.subr.bf16.mxu0 %v1944
    %2008 = vmatpush1.bf16.msra.mxu0 %v1943
    %2009 = vmatprep.subr.bf16.mxu0 %v1946
    %2010 = vmatpush1.bf16.msra.mxu0 %v1945
    %2011 = vmatprep.subr.bf16.mxu0 %v1948
    %2012 = vmatpush1.bf16.msra.mxu0 %v1947
    %2013 = vmatprep.subr.bf16.mxu0 %v1950
    %2014 = vmatpush1.bf16.msra.mxu0 %v1949
    %2015 = vmatprep.subr.bf16.mxu0 %v1952
    %2016 = vmatpush1.bf16.msra.mxu0 %v1951
    %2017 = vmatprep.subr.bf16.mxu0 %v1954
    %2018 = vmatpush1.bf16.msra.mxu0 %v1953
    %2019 = vmatprep.subr.bf16.mxu0 %v1956
    %2020 = vmatpush1.bf16.msra.mxu0 %v1955
    %2021 = vmatprep.subr.bf16.mxu0 %v1958
    %2022 = vmatpush1.bf16.msra.mxu0 %v1957
    %2023 = vmatprep.subr.bf16.mxu0 %v1960
    %2024 = vmatpush1.bf16.msra.mxu0 %v1959
    %2025 = vmatprep.mubr.bf16.mxu0 %v1774
    %2026 = vmatmul.mubr.bf16.gmra.mrb[0].mxu0 %v1773
    %v2027 = vpop.f32.mrb[0].mxu0
    %v2028 = vadd.f32 %v1826, %v2027
    %v2029 = vpop.f32.mrb[0].mxu0
    %v2030 = vadd.f32 %v1830, %v2029
    %v2031 = vpop.f32.mrb[0].mxu0
    %v2032 = vadd.f32 %v1826, %v2031
    %v2033 = vpop.f32.mrb[0].mxu0
    %v2034 = vadd.f32 %v1830, %v2033
    %2035 = vmatprep.mubr.bf16.mxu0 %v1776
    %2036 = vmatmul.mubr.bf16.gmra.mrb[0].mxu0 %v1775
    %v2037 = vpop.f32.mrb[0].mxu0
    %v2038 = vadd.f32 %v1826, %v2037
    %v2039 = vpop.f32.mrb[0].mxu0
    %v2040 = vadd.f32 %v1830, %v2039
    %v2041 = vpop.f32.mrb[0].mxu0
    %v2042 = vadd.f32 %v1826, %v2041
    %v2043 = vpop.f32.mrb[0].mxu0
    %v2044 = vadd.f32 %v1830, %v2043
    %2045 = vmatprep.mubr.bf16.mxu0 %v1778
    %2046 = vmatmul.mubr.bf16.gmra.mrb[0].mxu0 %v1777
    %v2047 = vpop.f32.mrb[0].mxu0
    %v2048 = vadd.f32 %v1826, %v2047
    %v2049 = vpop.f32.mrb[0].mxu0
    %v2050 = vadd.f32 %v1830, %v2049
    %v2051 = vpop.f32.mrb[0].mxu0
    %v2052 = vadd.f32 %v1826, %v2051
    %v2053 = vpop.f32.mrb[0].mxu0
    %v2054 = vadd.f32 %v1830, %v2053
    %2055 = vmatprep.mubr.bf16.mxu0 %v1780
    %2056 = vmatmul.mubr.bf16.gmra.mrb[0].mxu0 %v1779
    %v2057 = vpop.f32.mrb[0].mxu0
    %v2058 = vadd.f32 %v1826, %v2057
    %v2059 = vpop.f32.mrb[0].mxu0
    %v2060 = vadd.f32 %v1830, %v2059
    %v2061 = vpop.f32.mrb[0].mxu0
    %v2062 = vadd.f32 %v1826, %v2061
    %v2063 = vpop.f32.mrb[0].mxu0
    %v2064 = vadd.f32 %v1830, %v2063
    %2065 = vmatprep.mubr.bf16.mxu0 %v1782
    %2066 = vmatmul.mubr.bf16.gmra.mrb[0].mxu0 %v1781
    %v2067 = vpop.f32.mrb[0].mxu0
    %v2068 = vadd.f32 %v1826, %v2067
    %v2069 = vpop.f32.mrb[0].mxu0
    %v2070 = vadd.f32 %v1830, %v2069
    %v2071 = vpop.f32.mrb[0].mxu0
    %v2072 = vadd.f32 %v1826, %v2071
    %v2073 = vpop.f32.mrb[0].mxu0
    %v2074 = vadd.f32 %v1830, %v2073
    %2075 = vmatprep.mubr.bf16.mxu0 %v1784
    %2076 = vmatmul.mubr.bf16.gmra.mrb[0].mxu0 %v1783
    %v2077 = vpop.f32.mrb[0].mxu0
    %v2078 = vadd.f32 %v1826, %v2077
    %v2079 = vpop.f32.mrb[0].mxu0
    %v2080 = vadd.f32 %v1830, %v2079
    %v2081 = vpop.f32.mrb[0].mxu0
    %v2082 = vadd.f32 %v1826, %v2081
    %v2083 = vpop.f32.mrb[0].mxu0
    %v2084 = vadd.f32 %v1830, %v2083
    %2085 = vmatprep.mubr.bf16.mxu0 %v1786
    %2086 = vmatmul.mubr.bf16.gmra.mrb[0].mxu0 %v1785
    %v2087 = vpop.f32.mrb[0].mxu0
    %v2088 = vadd.f32 %v1826, %v2087
    %v2089 = vpop.f32.mrb[0].mxu0
    %v2090 = vadd.f32 %v1830, %v2089
    %v2091 = vpop.f32.mrb[0].mxu0
    %v2092 = vadd.f32 %v1826, %v2091
    %v2093 = vpop.f32.mrb[0].mxu0
    %v2094 = vadd.f32 %v1830, %v2093
    %2095 = vmatprep.mubr.bf16.mxu0 %v1788
    %2096 = vmatmul.mubr.bf16.gmra.mrb[0].mxu0 %v1787
    %v2097 = vpop.f32.mrb[0].mxu0
    %v2098 = vadd.f32 %v1826, %v2097
    %v2099 = vpop.f32.mrb[0].mxu0
    %v2100 = vadd.f32 %v1830, %v2099
    %v2101 = vpop.f32.mrb[0].mxu0
    %v2102 = vadd.f32 %v1826, %v2101
    %v2103 = vpop.f32.mrb[0].mxu0
    %v2104 = vadd.f32 %v1830, %v2103
    %2105 = vdwg.mxu0
    %v2106 = vxor.u32 %v2028, 2147483648
    %v2107 = vxor.u32 %v2030, 2147483648
    %v2108 = vxor.u32 %v2032, 2147483648
    %v2109 = vxor.u32 %v2034, 2147483648
    %v2110 = vxor.u32 %v2038, 2147483648
    %v2111 = vxor.u32 %v2040, 2147483648
    %v2112 = vxor.u32 %v2042, 2147483648
    %v2113 = vxor.u32 %v2044, 2147483648
    %v2114 = vxor.u32 %v2048, 2147483648
    %v2115 = vxor.u32 %v2050, 2147483648
    %v2116 = vxor.u32 %v2052, 2147483648
    %v2117 = vxor.u32 %v2054, 2147483648
    %v2118 = vxor.u32 %v2058, 2147483648
    %v2119 = vxor.u32 %v2060, 2147483648
    %v2120 = vxor.u32 %v2062, 2147483648
    %v2121 = vxor.u32 %v2064, 2147483648
    %v2122 = vxor.u32 %v2068, 2147483648
    %v2123 = vxor.u32 %v2070, 2147483648
    %v2124 = vxor.u32 %v2072, 2147483648
    %v2125 = vxor.u32 %v2074, 2147483648
    %v2126 = vxor.u32 %v2078, 2147483648
    %v2127 = vxor.u32 %v2080, 2147483648
    %v2128 = vxor.u32 %v2082, 2147483648
    %v2129 = vxor.u32 %v2084, 2147483648
    %v2130 = vxor.u32 %v2088, 2147483648
    %v2131 = vxor.u32 %v2090, 2147483648
    %v2132 = vxor.u32 %v2092, 2147483648
    %v2133 = vxor.u32 %v2094, 2147483648
    %v2134 = vxor.u32 %v2098, 2147483648
    %v2135 = vxor.u32 %v2100, 2147483648
    %v2136 = vxor.u32 %v2102, 2147483648
    %v2137 = vxor.u32 %v2104, 2147483648
    %v2138 = vmul.f32 %v2106, 1.442695
    %v2139 = vpow.pop %v2138
    %v2140 = vmul.f32 %v2107, 1.442695
    %v2141 = vpow.pop %v2140
    %v2142 = vmul.f32 %v2108, 1.442695
    %v2143 = vpow.pop %v2142
    %v2144 = vmul.f32 %v2109, 1.442695
    %v2145 = vpow.pop %v2144
    %v2146 = vmul.f32 %v2110, 1.442695
    %v2147 = vpow.pop %v2146
    %v2148 = vmul.f32 %v2111, 1.442695
    %v2149 = vpow.pop %v2148
    %v2150 = vmul.f32 %v2112, 1.442695
    %v2151 = vpow.pop %v2150
    %v2152 = vmul.f32 %v2113, 1.442695
    %v2153 = vpow.pop %v2152
    %v2154 = vmul.f32 %v2114, 1.442695
    %v2155 = vpow.pop %v2154
    %v2156 = vmul.f32 %v2115, 1.442695
    %v2157 = vpow.pop %v2156
    %v2158 = vmul.f32 %v2116, 1.442695
    %v2159 = vpow.pop %v2158
    %v2160 = vmul.f32 %v2117, 1.442695
    %v2161 = vpow.pop %v2160
    %v2162 = vmul.f32 %v2118, 1.442695
    %v2163 = vpow.pop %v2162
    %v2164 = vmul.f32 %v2119, 1.442695
    %v2165 = vpow.pop %v2164
    %v2166 = vmul.f32 %v2120, 1.442695
    %v2167 = vpow.pop %v2166
    %v2168 = vmul.f32 %v2121, 1.442695
    %v2169 = vpow.pop %v2168
    %v2170 = vmul.f32 %v2122, 1.442695
    %v2171 = vpow.pop %v2170
    %v2172 = vmul.f32 %v2123, 1.442695
    %v2173 = vpow.pop %v2172
    %v2174 = vmul.f32 %v2124, 1.442695
    %v2175 = vpow.pop %v2174
    %v2176 = vmul.f32 %v2125, 1.442695
    %v2177 = vpow.pop %v2176
    %v2178 = vmul.f32 %v2126, 1.442695
    %v2179 = vpow.pop %v2178
    %v2180 = vmul.f32 %v2127, 1.442695
    %v2181 = vpow.pop %v2180
    %v2182 = vmul.f32 %v2128, 1.442695
    %v2183 = vpow.pop %v2182
    %v2184 = vmul.f32 %v2129, 1.442695
    %v2185 = vpow.pop %v2184
    %v2186 = vmul.f32 %v2130, 1.442695
    %v2187 = vpow.pop %v2186
    %v2188 = vmul.f32 %v2131, 1.442695
    %v2189 = vpow.pop %v2188
    %v2190 = vmul.f32 %v2132, 1.442695
    %v2191 = vpow.pop %v2190
    %v2192 = vmul.f32 %v2133, 1.442695
    %v2193 = vpow.pop %v2192
    %v2194 = vmul.f32 %v2134, 1.442695
    %v2195 = vpow.pop %v2194
    %v2196 = vmul.f32 %v2135, 1.442695
    %v2197 = vpow.pop %v2196
    %v2198 = vmul.f32 %v2136, 1.442695
    %v2199 = vpow.pop %v2198
    %v2200 = vmul.f32 %v2137, 1.442695
    %v2201 = vpow.pop %v2200
    %v2202 = vadd.f32 %v2139, 1.0
    %v2203 = vadd.f32 %v2141, 1.0
    %v2204 = vadd.f32 %v2143, 1.0
    %v2205 = vadd.f32 %v2145, 1.0
    %v2206 = vadd.f32 %v2147, 1.0
    %v2207 = vadd.f32 %v2149, 1.0
    %v2208 = vadd.f32 %v2151, 1.0
    %v2209 = vadd.f32 %v2153, 1.0
    %v2210 = vadd.f32 %v2155, 1.0
    %v2211 = vadd.f32 %v2157, 1.0
    %v2212 = vadd.f32 %v2159, 1.0
    %v2213 = vadd.f32 %v2161, 1.0
    %v2214 = vadd.f32 %v2163, 1.0
    %v2215 = vadd.f32 %v2165, 1.0
    %v2216 = vadd.f32 %v2167, 1.0
    %v2217 = vadd.f32 %v2169, 1.0
    %v2218 = vadd.f32 %v2171, 1.0
    %v2219 = vadd.f32 %v2173, 1.0
    %v2220 = vadd.f32 %v2175, 1.0
    %v2221 = vadd.f32 %v2177, 1.0
    %v2222 = vadd.f32 %v2179, 1.0
    %v2223 = vadd.f32 %v2181, 1.0
    %v2224 = vadd.f32 %v2183, 1.0
    %v2225 = vadd.f32 %v2185, 1.0
    %v2226 = vadd.f32 %v2187, 1.0
    %v2227 = vadd.f32 %v2189, 1.0
    %v2228 = vadd.f32 %v2191, 1.0
    %v2229 = vadd.f32 %v2193, 1.0
    %v2230 = vadd.f32 %v2195, 1.0
    %v2231 = vadd.f32 %v2197, 1.0
    %v2232 = vadd.f32 %v2199, 1.0
    %v2233 = vadd.f32 %v2201, 1.0
    %v2234 = vrcp.pop %v2202
    %v2235 = vmul.f32 1.0, %v2234
    %v2236 = vrcp.pop %v2203
    %v2237 = vmul.f32 1.0, %v2236
    %v2238 = vrcp.pop %v2204
    %v2239 = vmul.f32 1.0, %v2238
    %v2240 = vrcp.pop %v2205
    %v2241 = vmul.f32 1.0, %v2240
    %v2242 = vrcp.pop %v2206
    %v2243 = vmul.f32 1.0, %v2242
    %v2244 = vrcp.pop %v2207
    %v2245 = vmul.f32 1.0, %v2244
    %v2246 = vrcp.pop %v2208
    %v2247 = vmul.f32 1.0, %v2246
    %v2248 = vrcp.pop %v2209
    %v2249 = vmul.f32 1.0, %v2248
    %v2250 = vrcp.pop %v2210
    %v2251 = vmul.f32 1.0, %v2250
    %v2252 = vrcp.pop %v2211
    %v2253 = vmul.f32 1.0, %v2252
    %v2254 = vrcp.pop %v2212
    %v2255 = vmul.f32 1.0, %v2254
    %v2256 = vrcp.pop %v2213
    %v2257 = vmul.f32 1.0, %v2256
    %v2258 = vrcp.pop %v2214
    %v2259 = vmul.f32 1.0, %v2258
    %v2260 = vrcp.pop %v2215
    %v2261 = vmul.f32 1.0, %v2260
    %v2262 = vrcp.pop %v2216
    %v2263 = vmul.f32 1.0, %v2262
    %v2264 = vrcp.pop %v2217
    %v2265 = vmul.f32 1.0, %v2264
    %v2266 = vrcp.pop %v2218
    %v2267 = vmul.f32 1.0, %v2266
    %v2268 = vrcp.pop %v2219
    %v2269 = vmul.f32 1.0, %v2268
    %v2270 = vrcp.pop %v2220
    %v2271 = vmul.f32 1.0, %v2270
    %v2272 = vrcp.pop %v2221
    %v2273 = vmul.f32 1.0, %v2272
    %v2274 = vrcp.pop %v2222
    %v2275 = vmul.f32 1.0, %v2274
    %v2276 = vrcp.pop %v2223
    %v2277 = vmul.f32 1.0, %v2276
    %v2278 = vrcp.pop %v2224
    %v2279 = vmul.f32 1.0, %v2278
    %v2280 = vrcp.pop %v2225
    %v2281 = vmul.f32 1.0, %v2280
    %v2282 = vrcp.pop %v2226
    %v2283 = vmul.f32 1.0, %v2282
    %v2284 = vrcp.pop %v2227
    %v2285 = vmul.f32 1.0, %v2284
    %v2286 = vrcp.pop %v2228
    %v2287 = vmul.f32 1.0, %v2286
    %v2288 = vrcp.pop %v2229
    %v2289 = vmul.f32 1.0, %v2288
    %v2290 = vrcp.pop %v2230
    %v2291 = vmul.f32 1.0, %v2290
    %v2292 = vrcp.pop %v2231
    %v2293 = vmul.f32 1.0, %v2292
    %v2294 = vrcp.pop %v2232
    %v2295 = vmul.f32 1.0, %v2294
    %v2296 = vrcp.pop %v2233
    %v2297 = vmul.f32 1.0, %v2296
    %v2298 = vmul.f32 %v2028, %v2235
    %v2299 = vmul.f32 %v2030, %v2237
    %v2300 = vmul.f32 %v2032, %v2239
    %v2301 = vmul.f32 %v2034, %v2241
    %v2302 = vmul.f32 %v2038, %v2243
    %v2303 = vmul.f32 %v2040, %v2245
    %v2304 = vmul.f32 %v2042, %v2247
    %v2305 = vmul.f32 %v2044, %v2249
    %v2306 = vmul.f32 %v2048, %v2251
    %v2307 = vmul.f32 %v2050, %v2253
    %v2308 = vmul.f32 %v2052, %v2255
    %v2309 = vmul.f32 %v2054, %v2257
    %v2310 = vmul.f32 %v2058, %v2259
    %v2311 = vmul.f32 %v2060, %v2261
    %v2312 = vmul.f32 %v2062, %v2263
    %v2313 = vmul.f32 %v2064, %v2265
    %v2314 = vmul.f32 %v2068, %v2267
    %v2315 = vmul.f32 %v2070, %v2269
    %v2316 = vmul.f32 %v2072, %v2271
    %v2317 = vmul.f32 %v2074, %v2273
    %v2318 = vmul.f32 %v2078, %v2275
    %v2319 = vmul.f32 %v2080, %v2277
    %v2320 = vmul.f32 %v2082, %v2279
    %v2321 = vmul.f32 %v2084, %v2281
    %v2322 = vmul.f32 %v2088, %v2283
    %v2323 = vmul.f32 %v2090, %v2285
    %v2324 = vmul.f32 %v2092, %v2287
    %v2325 = vmul.f32 %v2094, %v2289
    %v2326 = vmul.f32 %v2098, %v2291
    %v2327 = vmul.f32 %v2100, %v2293
    %v2328 = vmul.f32 %v2102, %v2295
    %v2329 = vmul.f32 %v2104, %v2297
    %v2330 = vpack.c.bf16 %v2300, %v2298
    %v2331 = vpack.c.bf16 %v2301, %v2299
    %v2332 = vpack.c.bf16 %v2304, %v2302
    %v2333 = vpack.c.bf16 %v2305, %v2303
    %v2334 = vpack.c.bf16 %v2308, %v2306
    %v2335 = vpack.c.bf16 %v2309, %v2307
    %v2336 = vpack.c.bf16 %v2312, %v2310
    %v2337 = vpack.c.bf16 %v2313, %v2311
    %v2338 = vpack.c.bf16 %v2316, %v2314
    %v2339 = vpack.c.bf16 %v2317, %v2315
    %v2340 = vpack.c.bf16 %v2320, %v2318
    %v2341 = vpack.c.bf16 %v2321, %v2319
    %v2342 = vpack.c.bf16 %v2324, %v2322
    %v2343 = vpack.c.bf16 %v2325, %v2323
    %v2344 = vpack.c.bf16 %v2328, %v2326
    %v2345 = vpack.c.bf16 %v2329, %v2327
    %v2346 = vld [vmem:[%s12] sm:$0xf]
    %v2347 = vld [vmem:[%s12 + $0x4] sm:$0xf]
    %v2348 = vld [vmem:[%s12 + $0x8] sm:$0xf]
    %v2349 = vld [vmem:[%s12 + $0xc] sm:$0xf]
    %v2350 = vld [vmem:[%s12 + $0x10] sm:$0xf]
    %v2351 = vld [vmem:[%s12 + $0x14] sm:$0xf]
    %v2352 = vld [vmem:[%s12 + $0x18] sm:$0xf]
    %v2353 = vld [vmem:[%s12 + $0x1c] sm:$0xf]
    %v2354 = vld [vmem:[%s12 + $0x20] sm:$0xf]
    %v2355 = vld [vmem:[%s12 + $0x24] sm:$0xf]
    %v2356 = vld [vmem:[%s12 + $0x28] sm:$0xf]
    %v2357 = vld [vmem:[%s12 + $0x2c] sm:$0xf]
    %v2358 = vld [vmem:[%s12 + $0x30] sm:$0xf]
    %v2359 = vld [vmem:[%s12 + $0x34] sm:$0xf]
    %v2360 = vld [vmem:[%s12 + $0x38] sm:$0xf]
    %v2361 = vld [vmem:[%s12 + $0x3c] sm:$0xf]
    %v2362 = vld [vmem:[%s12 + $0x40] sm:$0xf]
    %v2363 = vld [vmem:[%s12 + $0x44] sm:$0xf]
    %v2364 = vld [vmem:[%s12 + $0x48] sm:$0xf]
    %v2365 = vld [vmem:[%s12 + $0x4c] sm:$0xf]
    %v2366 = vld [vmem:[%s12 + $0x50] sm:$0xf]
    %v2367 = vld [vmem:[%s12 + $0x54] sm:$0xf]
    %v2368 = vld [vmem:[%s12 + $0x58] sm:$0xf]
    %v2369 = vld [vmem:[%s12 + $0x5c] sm:$0xf]
    %v2370 = vld [vmem:[%s12 + $0x60] sm:$0xf]
    %v2371 = vld [vmem:[%s12 + $0x64] sm:$0xf]
    %v2372 = vld [vmem:[%s12 + $0x68] sm:$0xf]
    %v2373 = vld [vmem:[%s12 + $0x6c] sm:$0xf]
    %v2374 = vld [vmem:[%s12 + $0x70] sm:$0xf]
    %v2375 = vld [vmem:[%s12 + $0x74] sm:$0xf]
    %v2376 = vld [vmem:[%s12 + $0x78] sm:$0xf]
    %v2377 = vld [vmem:[%s12 + $0x7c] sm:$0xf]
    %v2378 = vld [vmem:[%s13] sm:$0x1]
    %v2380 = vlaneseq
    %v2381 = vshrl.u32 %v2380, 7
    %v2382 = vsub.s32 0, %v2381
    %v2383 = vrot.slane %v2378, %v2382
    %v2417 = vunpack.c.l.b16 %v2346
    %v2418 = vunpack.c.l.b16 %v2347
    %v2419 = vunpack.c.l.b16 %v2348
    %v2420 = vunpack.c.l.b16 %v2349
    %v2421 = vunpack.c.l.b16 %v2350
    %v2422 = vunpack.c.l.b16 %v2351
    %v2423 = vunpack.c.l.b16 %v2352
    %v2424 = vunpack.c.l.b16 %v2353
    %v2425 = vunpack.c.l.b16 %v2354
    %v2426 = vunpack.c.l.b16 %v2355
    %v2427 = vunpack.c.l.b16 %v2356
    %v2428 = vunpack.c.l.b16 %v2357
    %v2429 = vunpack.c.l.b16 %v2358
    %v2430 = vunpack.c.l.b16 %v2359
    %v2431 = vunpack.c.l.b16 %v2360
    %v2432 = vunpack.c.l.b16 %v2361
    %v2433 = vunpack.c.l.b16 %v2362
    %v2434 = vunpack.c.l.b16 %v2363
    %v2435 = vunpack.c.l.b16 %v2364
    %v2436 = vunpack.c.l.b16 %v2365
    %v2437 = vunpack.c.l.b16 %v2366
    %v2438 = vunpack.c.l.b16 %v2367
    %v2439 = vunpack.c.l.b16 %v2368
    %v2440 = vunpack.c.l.b16 %v2369
    %v2441 = vunpack.c.l.b16 %v2370
    %v2442 = vunpack.c.l.b16 %v2371
    %v2443 = vunpack.c.l.b16 %v2372
    %v2444 = vunpack.c.l.b16 %v2373
    %v2445 = vunpack.c.l.b16 %v2374
    %v2446 = vunpack.c.l.b16 %v2375
    %v2447 = vunpack.c.l.b16 %v2376
    %v2448 = vunpack.c.l.b16 %v2377
    %v2449 = vpack.c.b16 %v2418, %v2417
    %v2450 = vpack.c.b16 %v2420, %v2419
    %v2451 = vpack.c.b16 %v2422, %v2421
    %v2452 = vpack.c.b16 %v2424, %v2423
    %v2453 = vpack.c.b16 %v2426, %v2425
    %v2454 = vpack.c.b16 %v2428, %v2427
    %v2455 = vpack.c.b16 %v2430, %v2429
    %v2456 = vpack.c.b16 %v2432, %v2431
    %v2457 = vpack.c.b16 %v2434, %v2433
    %v2458 = vpack.c.b16 %v2436, %v2435
    %v2459 = vpack.c.b16 %v2438, %v2437
    %v2460 = vpack.c.b16 %v2440, %v2439
    %v2461 = vpack.c.b16 %v2442, %v2441
    %v2462 = vpack.c.b16 %v2444, %v2443
    %v2463 = vpack.c.b16 %v2446, %v2445
    %v2464 = vpack.c.b16 %v2448, %v2447
    %2481 = vmatprep.subr.bf16.mxu0 0
    %2482 = vmatpush1.bf16.msra.mxu0 %v2449
    %2483 = vmatprep.subr.bf16.mxu0 0
    %2484 = vmatpush1.bf16.msra.mxu0 %v2450
    %2485 = vmatprep.subr.bf16.mxu0 0
    %2486 = vmatpush1.bf16.msra.mxu0 %v2451
    %2487 = vmatprep.subr.bf16.mxu0 0
    %2488 = vmatpush1.bf16.msra.mxu0 %v2452
    %2489 = vmatprep.subr.bf16.mxu0 0
    %2490 = vmatpush1.bf16.msra.mxu0 %v2453
    %2491 = vmatprep.subr.bf16.mxu0 0
    %2492 = vmatpush1.bf16.msra.mxu0 %v2454
    %2493 = vmatprep.subr.bf16.mxu0 0
    %2494 = vmatpush1.bf16.msra.mxu0 %v2455
    %2495 = vmatprep.subr.bf16.mxu0 0
    %2496 = vmatpush1.bf16.msra.mxu0 %v2456
    %2497 = vmatprep.subr.bf16.mxu0 0
    %2498 = vmatpush1.bf16.msra.mxu0 %v2457
    %2499 = vmatprep.subr.bf16.mxu0 0
    %2500 = vmatpush1.bf16.msra.mxu0 %v2458
    %2501 = vmatprep.subr.bf16.mxu0 0
    %2502 = vmatpush1.bf16.msra.mxu0 %v2459
    %2503 = vmatprep.subr.bf16.mxu0 0
    %2504 = vmatpush1.bf16.msra.mxu0 %v2460
    %2505 = vmatprep.subr.bf16.mxu0 0
    %2506 = vmatpush1.bf16.msra.mxu0 %v2461
    %2507 = vmatprep.subr.bf16.mxu0 0
    %2508 = vmatpush1.bf16.msra.mxu0 %v2462
    %2509 = vmatprep.subr.bf16.mxu0 0
    %2510 = vmatpush1.bf16.msra.mxu0 %v2463
    %2511 = vmatprep.subr.bf16.mxu0 0
    %2512 = vmatpush1.bf16.msra.mxu0 %v2464
    %2513 = vmatprep.mubr.bf16.mxu0 %v2331
    %2514 = vmatmul.mubr.bf16.gmra.mrb[0].mxu0 %v2330
    %v2515 = vpop.f32.mrb[0].mxu0
    %v2516 = vadd.f32 %v2383, %v2515
    %v2517 = vpop.f32.mrb[0].mxu0
    %v2518 = vpop.f32.mrb[0].mxu0
    %v2519 = vadd.f32 %v2383, %v2518
    %v2520 = vpop.f32.mrb[0].mxu0
    %2521 = vmatprep.mubr.bf16.mxu0 %v2333
    %2522 = vmatmul.mubr.bf16.gmra.mrb[0].mxu0 %v2332
    %v2523 = vpop.f32.mrb[0].mxu0
    %v2524 = vadd.f32 %v2383, %v2523
    %v2525 = vpop.f32.mrb[0].mxu0
    %v2526 = vpop.f32.mrb[0].mxu0
    %v2527 = vadd.f32 %v2383, %v2526
    %v2528 = vpop.f32.mrb[0].mxu0
    %2529 = vmatprep.mubr.bf16.mxu0 %v2335
    %2530 = vmatmul.mubr.bf16.gmra.mrb[0].mxu0 %v2334
    %v2531 = vpop.f32.mrb[0].mxu0
    %v2532 = vadd.f32 %v2383, %v2531
    %v2533 = vpop.f32.mrb[0].mxu0
    %v2534 = vpop.f32.mrb[0].mxu0
    %v2535 = vadd.f32 %v2383, %v2534
    %v2536 = vpop.f32.mrb[0].mxu0
    %2537 = vmatprep.mubr.bf16.mxu0 %v2337
    %2538 = vmatmul.mubr.bf16.gmra.mrb[0].mxu0 %v2336
    %v2539 = vpop.f32.mrb[0].mxu0
    %v2540 = vadd.f32 %v2383, %v2539
    %v2541 = vpop.f32.mrb[0].mxu0
    %v2542 = vpop.f32.mrb[0].mxu0
    %v2543 = vadd.f32 %v2383, %v2542
    %v2544 = vpop.f32.mrb[0].mxu0
    %2545 = vmatprep.mubr.bf16.mxu0 %v2339
    %2546 = vmatmul.mubr.bf16.gmra.mrb[0].mxu0 %v2338
    %v2547 = vpop.f32.mrb[0].mxu0
    %v2548 = vadd.f32 %v2383, %v2547
    %v2549 = vpop.f32.mrb[0].mxu0
    %v2550 = vpop.f32.mrb[0].mxu0
    %v2551 = vadd.f32 %v2383, %v2550
    %v2552 = vpop.f32.mrb[0].mxu0
    %2553 = vmatprep.mubr.bf16.mxu0 %v2341
    %2554 = vmatmul.mubr.bf16.gmra.mrb[0].mxu0 %v2340
    %v2555 = vpop.f32.mrb[0].mxu0
    %v2556 = vadd.f32 %v2383, %v2555
    %v2557 = vpop.f32.mrb[0].mxu0
    %v2558 = vpop.f32.mrb[0].mxu0
    %v2559 = vadd.f32 %v2383, %v2558
    %v2560 = vpop.f32.mrb[0].mxu0
    %2561 = vmatprep.mubr.bf16.mxu0 %v2343
    %2562 = vmatmul.mubr.bf16.gmra.mrb[0].mxu0 %v2342
    %v2563 = vpop.f32.mrb[0].mxu0
    %v2564 = vadd.f32 %v2383, %v2563
    %v2565 = vpop.f32.mrb[0].mxu0
    %v2566 = vpop.f32.mrb[0].mxu0
    %v2567 = vadd.f32 %v2383, %v2566
    %v2568 = vpop.f32.mrb[0].mxu0
    %2569 = vmatprep.mubr.bf16.mxu0 %v2345
    %2570 = vmatmul.mubr.bf16.gmra.mrb[0].mxu0 %v2344
    %v2571 = vpop.f32.mrb[0].mxu0
    %v2572 = vadd.f32 %v2383, %v2571
    %v2573 = vpop.f32.mrb[0].mxu0
    %v2574 = vpop.f32.mrb[0].mxu0
    %v2575 = vadd.f32 %v2383, %v2574
    %v2576 = vpop.f32.mrb[0].mxu0
    %2577 = vdwg.mxu0
    %v2578 = vld [vmem:[%s14] sm:$0xf]
    %v2579 = vld [vmem:[%s14 + $0x4] sm:$0xf]
    %v2580 = vld [vmem:[%s14 + $0x8] sm:$0xf]
    %v2581 = vld [vmem:[%s14 + $0xc] sm:$0xf]
    %v2582 = vld [vmem:[%s14 + $0x10] sm:$0xf]
    %v2583 = vld [vmem:[%s14 + $0x14] sm:$0xf]
    %v2584 = vld [vmem:[%s14 + $0x18] sm:$0xf]
    %v2585 = vld [vmem:[%s14 + $0x1c] sm:$0xf]
    %v2586 = vld [vmem:[%s14 + $0x20] sm:$0xf]
    %v2587 = vld [vmem:[%s14 + $0x24] sm:$0xf]
    %v2588 = vld [vmem:[%s14 + $0x28] sm:$0xf]
    %v2589 = vld [vmem:[%s14 + $0x2c] sm:$0xf]
    %v2590 = vld [vmem:[%s14 + $0x30] sm:$0xf]
    %v2591 = vld [vmem:[%s14 + $0x34] sm:$0xf]
    %v2592 = vld [vmem:[%s14 + $0x38] sm:$0xf]
    %v2593 = vld [vmem:[%s14 + $0x3c] sm:$0xf]
    %v2594 = vld [vmem:[%s14 + $0x40] sm:$0xf]
    %v2595 = vld [vmem:[%s14 + $0x44] sm:$0xf]
    %v2596 = vld [vmem:[%s14 + $0x48] sm:$0xf]
    %v2597 = vld [vmem:[%s14 + $0x4c] sm:$0xf]
    %v2598 = vld [vmem:[%s14 + $0x50] sm:$0xf]
    %v2599 = vld [vmem:[%s14 + $0x54] sm:$0xf]
    %v2600 = vld [vmem:[%s14 + $0x58] sm:$0xf]
    %v2601 = vld [vmem:[%s14 + $0x5c] sm:$0xf]
    %v2602 = vld [vmem:[%s14 + $0x60] sm:$0xf]
    %v2603 = vld [vmem:[%s14 + $0x64] sm:$0xf]
    %v2604 = vld [vmem:[%s14 + $0x68] sm:$0xf]
    %v2605 = vld [vmem:[%s14 + $0x6c] sm:$0xf]
    %v2606 = vld [vmem:[%s14 + $0x70] sm:$0xf]
    %v2607 = vld [vmem:[%s14 + $0x74] sm:$0xf]
    %v2608 = vld [vmem:[%s14 + $0x78] sm:$0xf]
    %v2609 = vld [vmem:[%s14 + $0x7c] sm:$0xf]
    %v2610 = vld [vmem:[%s15] sm:$0x1]
    %v2612 = vlaneseq
    %v2613 = vshrl.u32 %v2612, 7
    %v2614 = vsub.s32 0, %v2613
    %v2615 = vrot.slane %v2610, %v2614
    %v2649 = vunpack.c.l.b16 %v2578
    %v2650 = vunpack.c.l.b16 %v2579
    %v2651 = vunpack.c.l.b16 %v2580
    %v2652 = vunpack.c.l.b16 %v2581
    %v2653 = vunpack.c.l.b16 %v2582
    %v2654 = vunpack.c.l.b16 %v2583
    %v2655 = vunpack.c.l.b16 %v2584
    %v2656 = vunpack.c.l.b16 %v2585
    %v2657 = vunpack.c.l.b16 %v2586
    %v2658 = vunpack.c.l.b16 %v2587
    %v2659 = vunpack.c.l.b16 %v2588
    %v2660 = vunpack.c.l.b16 %v2589
    %v2661 = vunpack.c.l.b16 %v2590
    %v2662 = vunpack.c.l.b16 %v2591
    %v2663 = vunpack.c.l.b16 %v2592
    %v2664 = vunpack.c.l.b16 %v2593
    %v2665 = vunpack.c.l.b16 %v2594
    %v2666 = vunpack.c.l.b16 %v2595
    %v2667 = vunpack.c.l.b16 %v2596
    %v2668 = vunpack.c.l.b16 %v2597
    %v2669 = vunpack.c.l.b16 %v2598
    %v2670 = vunpack.c.l.b16 %v2599
    %v2671 = vunpack.c.l.b16 %v2600
    %v2672 = vunpack.c.l.b16 %v2601
    %v2673 = vunpack.c.l.b16 %v2602
    %v2674 = vunpack.c.l.b16 %v2603
    %v2675 = vunpack.c.l.b16 %v2604
    %v2676 = vunpack.c.l.b16 %v2605
    %v2677 = vunpack.c.l.b16 %v2606
    %v2678 = vunpack.c.l.b16 %v2607
    %v2679 = vunpack.c.l.b16 %v2608
    %v2680 = vunpack.c.l.b16 %v2609
    %v2681 = vpack.c.b16 %v2650, %v2649
    %v2682 = vpack.c.b16 %v2652, %v2651
    %v2683 = vpack.c.b16 %v2654, %v2653
    %v2684 = vpack.c.b16 %v2656, %v2655
    %v2685 = vpack.c.b16 %v2658, %v2657
    %v2686 = vpack.c.b16 %v2660, %v2659
    %v2687 = vpack.c.b16 %v2662, %v2661
    %v2688 = vpack.c.b16 %v2664, %v2663
    %v2689 = vpack.c.b16 %v2666, %v2665
    %v2690 = vpack.c.b16 %v2668, %v2667
    %v2691 = vpack.c.b16 %v2670, %v2669
    %v2692 = vpack.c.b16 %v2672, %v2671
    %v2693 = vpack.c.b16 %v2674, %v2673
    %v2694 = vpack.c.b16 %v2676, %v2675
    %v2695 = vpack.c.b16 %v2678, %v2677
    %v2696 = vpack.c.b16 %v2680, %v2679
    %2713 = vmatprep.subr.bf16.mxu0 0
    %2714 = vmatpush1.bf16.msra.mxu0 %v2681
    %2715 = vmatprep.subr.bf16.mxu0 0
    %2716 = vmatpush1.bf16.msra.mxu0 %v2682
    %2717 = vmatprep.subr.bf16.mxu0 0
    %2718 = vmatpush1.bf16.msra.mxu0 %v2683
    %2719 = vmatprep.subr.bf16.mxu0 0
    %2720 = vmatpush1.bf16.msra.mxu0 %v2684
    %2721 = vmatprep.subr.bf16.mxu0 0
    %2722 = vmatpush1.bf16.msra.mxu0 %v2685
    %2723 = vmatprep.subr.bf16.mxu0 0
    %2724 = vmatpush1.bf16.msra.mxu0 %v2686
    %2725 = vmatprep.subr.bf16.mxu0 0
    %2726 = vmatpush1.bf16.msra.mxu0 %v2687
    %2727 = vmatprep.subr.bf16.mxu0 0
    %2728 = vmatpush1.bf16.msra.mxu0 %v2688
    %2729 = vmatprep.subr.bf16.mxu0 0
    %2730 = vmatpush1.bf16.msra.mxu0 %v2689
    %2731 = vmatprep.subr.bf16.mxu0 0
    %2732 = vmatpush1.bf16.msra.mxu0 %v2690
    %2733 = vmatprep.subr.bf16.mxu0 0
    %2734 = vmatpush1.bf16.msra.mxu0 %v2691
    %2735 = vmatprep.subr.bf16.mxu0 0
    %2736 = vmatpush1.bf16.msra.mxu0 %v2692
    %2737 = vmatprep.subr.bf16.mxu0 0
    %2738 = vmatpush1.bf16.msra.mxu0 %v2693
    %2739 = vmatprep.subr.bf16.mxu0 0
    %2740 = vmatpush1.bf16.msra.mxu0 %v2694
    %2741 = vmatprep.subr.bf16.mxu0 0
    %2742 = vmatpush1.bf16.msra.mxu0 %v2695
    %2743 = vmatprep.subr.bf16.mxu0 0
    %2744 = vmatpush1.bf16.msra.mxu0 %v2696
    %2745 = vmatprep.mubr.bf16.mxu0 %v2331
    %2746 = vmatmul.mubr.bf16.gmra.mrb[0].mxu0 %v2330
    %v2747 = vpop.f32.mrb[0].mxu0
    %v2748 = vadd.f32 %v2615, %v2747
    %v2749 = vpop.f32.mrb[0].mxu0
    %v2750 = vpop.f32.mrb[0].mxu0
    %v2751 = vadd.f32 %v2615, %v2750
    %v2752 = vpop.f32.mrb[0].mxu0
    %2753 = vmatprep.mubr.bf16.mxu0 %v2333
    %2754 = vmatmul.mubr.bf16.gmra.mrb[0].mxu0 %v2332
    %v2755 = vpop.f32.mrb[0].mxu0
    %v2756 = vadd.f32 %v2615, %v2755
    %v2757 = vpop.f32.mrb[0].mxu0
    %v2758 = vpop.f32.mrb[0].mxu0
    %v2759 = vadd.f32 %v2615, %v2758
    %v2760 = vpop.f32.mrb[0].mxu0
    %2761 = vmatprep.mubr.bf16.mxu0 %v2335
    %2762 = vmatmul.mubr.bf16.gmra.mrb[0].mxu0 %v2334
    %v2763 = vpop.f32.mrb[0].mxu0
    %v2764 = vadd.f32 %v2615, %v2763
    %v2765 = vpop.f32.mrb[0].mxu0
    %v2766 = vpop.f32.mrb[0].mxu0
    %v2767 = vadd.f32 %v2615, %v2766
    %v2768 = vpop.f32.mrb[0].mxu0
    %2769 = vmatprep.mubr.bf16.mxu0 %v2337
    %2770 = vmatmul.mubr.bf16.gmra.mrb[0].mxu0 %v2336
    %v2771 = vpop.f32.mrb[0].mxu0
    %v2772 = vadd.f32 %v2615, %v2771
    %v2773 = vpop.f32.mrb[0].mxu0
    %v2774 = vpop.f32.mrb[0].mxu0
    %v2775 = vadd.f32 %v2615, %v2774
    %v2776 = vpop.f32.mrb[0].mxu0
    %2777 = vmatprep.mubr.bf16.mxu0 %v2339
    %2778 = vmatmul.mubr.bf16.gmra.mrb[0].mxu0 %v2338
    %v2779 = vpop.f32.mrb[0].mxu0
    %v2780 = vadd.f32 %v2615, %v2779
    %v2781 = vpop.f32.mrb[0].mxu0
    %v2782 = vpop.f32.mrb[0].mxu0
    %v2783 = vadd.f32 %v2615, %v2782
    %v2784 = vpop.f32.mrb[0].mxu0
    %2785 = vmatprep.mubr.bf16.mxu0 %v2341
    %2786 = vmatmul.mubr.bf16.gmra.mrb[0].mxu0 %v2340
    %v2787 = vpop.f32.mrb[0].mxu0
    %v2788 = vadd.f32 %v2615, %v2787
    %v2789 = vpop.f32.mrb[0].mxu0
    %v2790 = vpop.f32.mrb[0].mxu0
    %v2791 = vadd.f32 %v2615, %v2790
    %v2792 = vpop.f32.mrb[0].mxu0
    %2793 = vmatprep.mubr.bf16.mxu0 %v2343
    %2794 = vmatmul.mubr.bf16.gmra.mrb[0].mxu0 %v2342
    %v2795 = vpop.f32.mrb[0].mxu0
    %v2796 = vadd.f32 %v2615, %v2795
    %v2797 = vpop.f32.mrb[0].mxu0
    %v2798 = vpop.f32.mrb[0].mxu0
    %v2799 = vadd.f32 %v2615, %v2798
    %v2800 = vpop.f32.mrb[0].mxu0
    %2801 = vmatprep.mubr.bf16.mxu0 %v2345
    %2802 = vmatmul.mubr.bf16.gmra.mrb[0].mxu0 %v2344
    %v2803 = vpop.f32.mrb[0].mxu0
    %v2804 = vadd.f32 %v2615, %v2803
    %v2805 = vpop.f32.mrb[0].mxu0
    %v2806 = vpop.f32.mrb[0].mxu0
    %v2807 = vadd.f32 %v2615, %v2806
    %v2808 = vpop.f32.mrb[0].mxu0
    %2809 = vdwg.mxu0
    %v2810 = vadd.f32 %v2516, 2.0
    %v2811 = vadd.f32 %v2519, 2.0
    %v2812 = vadd.f32 %v2524, 2.0
    %v2813 = vadd.f32 %v2527, 2.0
    %v2814 = vadd.f32 %v2532, 2.0
    %v2815 = vadd.f32 %v2535, 2.0
    %v2816 = vadd.f32 %v2540, 2.0
    %v2817 = vadd.f32 %v2543, 2.0
    %v2818 = vadd.f32 %v2548, 2.0
    %v2819 = vadd.f32 %v2551, 2.0
    %v2820 = vadd.f32 %v2556, 2.0
    %v2821 = vadd.f32 %v2559, 2.0
    %v2822 = vadd.f32 %v2564, 2.0
    %v2823 = vadd.f32 %v2567, 2.0
    %v2824 = vadd.f32 %v2572, 2.0
    %v2825 = vadd.f32 %v2575, 2.0
    %v2826 = vmul.f32 %v732, %v2810
    %v2827 = vmul.f32 %v733, %v2811
    %v2828 = vmul.f32 %v734, %v2812
    %v2829 = vmul.f32 %v735, %v2813
    %v2830 = vmul.f32 %v736, %v2814
    %v2831 = vmul.f32 %v737, %v2815
    %v2832 = vmul.f32 %v738, %v2816
    %v2833 = vmul.f32 %v739, %v2817
    %v2834 = vmul.f32 %v740, %v2818
    %v2835 = vmul.f32 %v741, %v2819
    %v2836 = vmul.f32 %v742, %v2820
    %v2837 = vmul.f32 %v743, %v2821
    %v2838 = vmul.f32 %v744, %v2822
    %v2839 = vmul.f32 %v745, %v2823
    %v2840 = vmul.f32 %v746, %v2824
    %v2841 = vmul.f32 %v747, %v2825
    %v2842 = vadd.f32 %v2826, %v2748
    %v2843 = vadd.f32 %v2827, %v2751
    %v2844 = vadd.f32 %v2828, %v2756
    %v2845 = vadd.f32 %v2829, %v2759
    %v2846 = vadd.f32 %v2830, %v2764
    %v2847 = vadd.f32 %v2831, %v2767
    %v2848 = vadd.f32 %v2832, %v2772
    %v2849 = vadd.f32 %v2833, %v2775
    %v2850 = vadd.f32 %v2834, %v2780
    %v2851 = vadd.f32 %v2835, %v2783
    %v2852 = vadd.f32 %v2836, %v2788
    %v2853 = vadd.f32 %v2837, %v2791
    %v2854 = vadd.f32 %v2838, %v2796
    %v2855 = vadd.f32 %v2839, %v2799
    %v2856 = vadd.f32 %v2840, %v2804
    %v2857 = vadd.f32 %v2841, %v2807
    %2858 = vst.msk [vmem:[#allocation2] sm:$0xff] %vm151, %v2842
    %2859 = vst.msk [vmem:[#allocation2 + $0x8] sm:$0xff] %vm151, %v2843
    %2860 = vst.msk [vmem:[#allocation2 + $0x10] sm:$0xff] %vm151, %v2844
    %2861 = vst.msk [vmem:[#allocation2 + $0x18] sm:$0xff] %vm151, %v2845
    %2862 = vst.msk [vmem:[#allocation2 + $0x20] sm:$0xff] %vm151, %v2846
    %2863 = vst.msk [vmem:[#allocation2 + $0x28] sm:$0xff] %vm151, %v2847
    %2864 = vst.msk [vmem:[#allocation2 + $0x30] sm:$0xff] %vm151, %v2848
    %2865 = vst.msk [vmem:[#allocation2 + $0x38] sm:$0xff] %vm151, %v2849
    %2866 = vst.msk [vmem:[#allocation2 + $0x40] sm:$0xff] %vm151, %v2850
    %2867 = vst.msk [vmem:[#allocation2 + $0x48] sm:$0xff] %vm151, %v2851
    %2868 = vst.msk [vmem:[#allocation2 + $0x50] sm:$0xff] %vm151, %v2852
    %2869 = vst.msk [vmem:[#allocation2 + $0x58] sm:$0xff] %vm151, %v2853
    %2870 = vst.msk [vmem:[#allocation2 + $0x60] sm:$0xff] %vm151, %v2854
    %2871 = vst.msk [vmem:[#allocation2 + $0x68] sm:$0xff] %vm151, %v2855
    %2872 = vst.msk [vmem:[#allocation2 + $0x70] sm:$0xff] %vm151, %v2856
    %2873 = vst.msk [vmem:[#allocation2 + $0x78] sm:$0xff] %vm151, %v2857
    // Predicated region
    $region66: #{gfm_forward.1} parent=1 // pred_check
      _
    $region67: #{gfm_forward.1} parent=1 // pred_check_branch
      %2875 = sbr.rel (0) target = $region69
    $region68: #{gfm_forward.1} parent=1 // pred_region
      %s2877 = ssub.s32 2048, 2048
      %2878 = vsyncadd [#allocation3], %s2877
      %s2879 = sshll.u32 [#allocation2], 4
      %s2880 = int_to_ptr.vmem [resolvable:$true] %s2879
      %2885 = dma.vmem_to_hbm [thread:$0]  %s2880, 2048, %s16, [#allocation3], 128, 128, 8
    $region69: #{gfm_forward.1} parent=1 // pred_fallthru
      _
    // Predicated region
    $region70: #{gfm_forward.1} parent=1 // pred_check
      _
    $region71: #{gfm_forward.1} parent=1 // pred_check_branch
      %2887 = sbr.rel (0) target = $region73
    $region72: #{gfm_forward.1} parent=1 // pred_region
      %2888 = dma.done [#allocation3], 2048
    $region73: #{gfm_forward.1} parent=1 // pred_fallthru
      _
    %2889 = vsyncpa [#allocation3], 1

</llo_original>
